<compile_context>
chip_gen: v7x
topology: tpu7x:2x2x1
jax: 0.10.0
libtpu: 0.0.40
codegen_flags: <defaults>
</compile_context>

<pallas_src>
import jax
import jax.numpy as jnp
from jax import lax
from jax.experimental import pallas as pl
from jax.experimental.pallas import tpu as pltpu


def lstm_kernel(x_ref, wih_ref, whh_ref, b_ref, out_ref, xg_sc):
    """Whole sequence in one kernel invocation.

    x_ref   : (T, Bp, D)   time-major input, batch padded to a multiple of 8
    wih_ref : (D, 4H)      W_ih^T, gates [i|f|g|o] contiguous along last dim
    whh_ref : (H, 4H)      W_hh^T
    b_ref   : (1, 4H)      b_ih + b_hh (fused bias)
    out_ref : (T, Bp, H)
    xg_sc   : (T, Bp, 4H)  VMEM scratch for precomputed input-gate contributions
    """
    T, Bp, D = x_ref.shape
    H = whh_ref.shape[0]
    G = 4 * H

    # One dense, lane/sublane-packed matmul for the non-recurrent part of all gates.
    x_all = x_ref[...].reshape(T * Bp, D)                       # (T*Bp, D)
    xg = jnp.dot(x_all, wih_ref[...],
                 preferred_element_type=jnp.float32) + b_ref[...]
    xg_sc[...] = xg.reshape(T, Bp, G)

    whh = whh_ref[...]                                          # hoisted (H, 4H)

    def step(t, carry):
        h, c = carry
        # Single lane-dense (Bp, 4H) gate tile per step.
        gates = xg_sc[t] + jnp.dot(h, whh,
                                   preferred_element_type=jnp.float32)
        i_g = jax.nn.sigmoid(gates[:, 0 * H:1 * H])
        f_g = jax.nn.sigmoid(gates[:, 1 * H:2 * H])
        g_g = jnp.tanh(gates[:, 2 * H:3 * H])
        o_g = jax.nn.sigmoid(gates[:, 3 * H:4 * H])
        c_new = f_g * c + i_g * g_g
        h_new = o_g * jnp.tanh(c_new)
        out_ref[t] = h_new.astype(out_ref.dtype)
        return (h_new, c_new)

    h0 = jnp.zeros((Bp, H), jnp.float32)
    c0 = jnp.zeros((Bp, H), jnp.float32)
    lax.fori_loop(0, T, step, (h0, c0), unroll=True)


def text_encoder_forward(x_btd, w_ih, w_hh, b_ih, b_hh):
    """x_btd: (B, T, D_in) float32. Weights in PyTorch LSTM layout:
       w_ih (4H, D_in), w_hh (4H, H), b_ih (4H,), b_hh (4H,).
       Returns (B, T, H)."""
    B, T, D = x_btd.shape
    H = w_hh.shape[1]
    assert w_ih.shape == (4 * H, D)
    G = 4 * H
    Bp = ((B + 7) // 8) * 8  # pad batch to full sublane width

    # Fused, transposed weights: gate blocks contiguous along the last (lane) dim.
    wih_t = jnp.asarray(w_ih, jnp.float32).T          # (D, 4H)
    whh_t = jnp.asarray(w_hh, jnp.float32).T          # (H, 4H)
    b = (b_ih + b_hh).reshape(1, G).astype(jnp.float32)

    x = jnp.asarray(x_btd, jnp.float32)
    if Bp != B:
        x = jnp.pad(x, ((0, Bp - B), (0, 0), (0, 0)))
    x_tbd = jnp.transpose(x, (1, 0, 2))               # (T, Bp, D)

    out_tbh = pl.pallas_call(
        lstm_kernel,
        out_shape=jax.ShapeDtypeStruct((T, Bp, H), jnp.float32),
        grid_spec=pltpu.PrefetchScalarGridSpec(
            num_scalar_prefetch=0,
            grid=(1,),
            in_specs=[
                pl.BlockSpec((T, Bp, D), lambda i: (0, 0, 0)),
                pl.BlockSpec((D, G), lambda i: (0, 0)),
                pl.BlockSpec((H, G), lambda i: (0, 0)),
                pl.BlockSpec((1, G), lambda i: (0, 0)),
            ],
            out_specs=pl.BlockSpec((T, Bp, H), lambda i: (0, 0, 0)),
            scratch_shapes=[
                pltpu.VMEM((T, Bp, G), jnp.float32),  # precomputed x-gate contributions
            ],
        ),
        compiler_params=pltpu.CompilerParams(
            dimension_semantics=("arbitrary",),  # single sequential invocation
        ),
    )(x_tbd, wih_t, whh_t, b)

    return jnp.transpose(out_tbh, (1, 0, 2))[:B]      # (B, T, H)


def lstm_reference(x_btd, w_ih, w_hh, b_ih, b_hh):
    """Pure-JAX reference for correctness check."""
    B, T, D = x_btd.shape
    H = w_hh.shape[1]
    x_tbd = jnp.transpose(x_btd, (1, 0, 2))

    def step(carry, x_t):
        h, c = carry
        gates = x_t @ w_ih.T + b_ih + h @ w_hh.T + b_hh
        i, f, g, o = jnp.split(gates, 4, axis=-1)
        i = jax.nn.sigmoid(i); f = jax.nn.sigmoid(f)
        g = jnp.tanh(g); o = jax.nn.sigmoid(o)
        c = f * c + i * g
        h = o * jnp.tanh(c)
        return (h, c), h

    init = (jnp.zeros((B, H), jnp.float32), jnp.zeros((B, H), jnp.float32))
    _, hs = lax.scan(step, init, x_tbd)
    return jnp.transpose(hs, (1, 0, 2))


if __name__ == "__main__":
    # Small shapes consistent with TextEncoder(input_size, hidden_size) LSTM forward.
    B, T, D_IN, H = 2, 8, 32, 32

    key = jax.random.PRNGKey(0)
    kx, k1, k2, k3, k4 = jax.random.split(key, 5)

    x = jax.random.normal(kx, (B, T, D_IN), dtype=jnp.float32)

    # Deterministic parameter init (mimic PyTorch uniform(-1/sqrt(H), 1/sqrt(H)))
    bound = 1.0 / jnp.sqrt(jnp.float32(H))
    w_ih = jax.random.uniform(k1, (4 * H, D_IN), minval=-bound, maxval=bound, dtype=jnp.float32)
    w_hh = jax.random.uniform(k2, (4 * H, H), minval=-bound, maxval=bound, dtype=jnp.float32)
    b_ih = jax.random.uniform(k3, (4 * H,), minval=-bound, maxval=bound, dtype=jnp.float32)
    b_hh = jax.random.uniform(k4, (4 * H,), minval=-bound, maxval=bound, dtype=jnp.float32)

    out = text_encoder_forward(x, w_ih, w_hh, b_ih, b_hh)
    out = jax.block_until_ready(out)

    ref = jax.block_until_ready(lstm_reference(x, w_ih, w_hh, b_ih, b_hh))
    if not jnp.allclose(out, ref, atol=1e-5, rtol=1e-5):
        raise AssertionError("Pallas LSTM output mismatch vs reference")

    print("KERNEL_OK")
</pallas_src>

<mosaic_0001>
module attributes {stable_mosaic.version = 11 : i64} {
  func.func @lstm_kernel(%arg0: i32, %arg1: memref<8x8x32xf32, #tpu.memory_space<vmem>>, %arg2: memref<32x128xf32, #tpu.memory_space<vmem>>, %arg3: memref<32x128xf32, #tpu.memory_space<vmem>>, %arg4: memref<1x128xf32, #tpu.memory_space<vmem>>, %arg5: memref<8x8x32xf32, #tpu.memory_space<vmem>>, %arg6: memref<8x8x128xf32, #tpu.memory_space<vmem>>) attributes {dimension_semantics = [#tpu.dimension_semantics<arbitrary>], iteration_bounds = array<i64: 1>, scalar_prefetch = 0 : i64, scratch_operands = 1 : i64, tpu.core_type = #tpu.core_type<tc>, window_params = [{pipeline_mode = #tpu.pipeline_mode<synchronous>, transform_indices = @transform_0, window_bounds = array<i64: 8, 8, 32>}, {pipeline_mode = #tpu.pipeline_mode<synchronous>, transform_indices = @transform_1, window_bounds = array<i64: 32, 128>}, {pipeline_mode = #tpu.pipeline_mode<synchronous>, transform_indices = @transform_2, window_bounds = array<i64: 32, 128>}, {pipeline_mode = #tpu.pipeline_mode<synchronous>, transform_indices = @transform_3, window_bounds = array<i64: 1, 128>}, {pipeline_mode = #tpu.pipeline_mode<synchronous>, transform_indices = @transform_4, window_bounds = array<i64: 8, 8, 32>}]} {
    %c0 = arith.constant 0 : index
    %c0_0 = arith.constant 0 : index
    %c0_1 = arith.constant 0 : index
    %0 = vector.load %arg1[%c0, %c0_0, %c0_1] : memref<8x8x32xf32, #tpu.memory_space<vmem>>, vector<8x8x32xf32>
    %1 = vector.shape_cast %0 : vector<8x8x32xf32> to vector<64x32xf32>
    %c0_2 = arith.constant 0 : index
    %c0_3 = arith.constant 0 : index
    %2 = vector.load %arg2[%c0_2, %c0_3] : memref<32x128xf32, #tpu.memory_space<vmem>>, vector<32x128xf32>
    %cst = arith.constant dense<0.000000e+00> : vector<64x128xf32>
    %3 = tpu.matmul %1, %2, %cst {dimension_numbers = #tpu.dot_dimension_numbers<[1], [0], [0], [1], [0, 0, 1, 1], [], []>} : vector<64x32xf32>, vector<32x128xf32>, vector<64x128xf32> -> vector<64x128xf32>
    %c0_4 = arith.constant 0 : index
    %c0_5 = arith.constant 0 : index
    %4 = vector.load %arg4[%c0_4, %c0_5] : memref<1x128xf32, #tpu.memory_space<vmem>>, vector<1x128xf32>
    %5 = vector.broadcast %4 : vector<1x128xf32> to vector<64x128xf32>
    %6 = arith.addf %3, %5 : vector<64x128xf32>
    %7 = vector.shape_cast %6 : vector<64x128xf32> to vector<8x8x128xf32>
    %c0_6 = arith.constant 0 : index
    %c0_7 = arith.constant 0 : index
    %c0_8 = arith.constant 0 : index
    %8 = vector.load %arg6[%c0_6, %c0_7, %c0_8] : memref<8x8x128xf32, #tpu.memory_space<vmem>>, vector<8x8x128xf32>
    tpu.vector_store %arg6[%c0_6, %c0_7, %c0_8], %7 {strides = array<i32>} : memref<8x8x128xf32, #tpu.memory_space<vmem>>, vector<8x8x128xf32>,
    %c0_9 = arith.constant 0 : index
    %c0_10 = arith.constant 0 : index
    %9 = vector.load %arg3[%c0_9, %c0_10] : memref<32x128xf32, #tpu.memory_space<vmem>>, vector<32x128xf32>
    %cst_11 = arith.constant 0.000000e+00 : f32
    %10 = vector.broadcast %cst_11 : f32 to vector<8x32xf32>
    %cst_12 = arith.constant 0.000000e+00 : f32
    %11 = vector.broadcast %cst_12 : f32 to vector<8x32xf32>
    %c0_i32 = arith.constant 0 : i32
    %12 = arith.index_cast %c0_i32 : i32 to index
    %c0_13 = arith.constant 0 : index
    %c0_14 = arith.constant 0 : index
    %13 = vector.load %arg6[%12, %c0_13, %c0_14] : memref<8x8x128xf32, #tpu.memory_space<vmem>>, vector<1x8x128xf32>
    %14 = vector.shape_cast %13 : vector<1x8x128xf32> to vector<8x128xf32>
    %cst_15 = arith.constant dense<0.000000e+00> : vector<8x128xf32>
    %15 = tpu.matmul %10, %9, %cst_15 {dimension_numbers = #tpu.dot_dimension_numbers<[1], [0], [0], [1], [0, 0, 1, 1], [], []>} : vector<8x32xf32>, vector<32x128xf32>, vector<8x128xf32> -> vector<8x128xf32>
    %16 = arith.addf %14, %15 : vector<8x128xf32>
    %17 = vector.extract_strided_slice %16 {offsets = [0, 0], sizes = [8, 32], strides = [1, 1]} : vector<8x128xf32> to vector<8x32xf32>
    %18 = arith.negf %17 : vector<8x32xf32>
    %19 = math.exp %18 : vector<8x32xf32>
    %cst_16 = arith.constant 1.000000e+00 : f32
    %20 = vector.broadcast %cst_16 : f32 to vector<8x32xf32>
    %21 = arith.addf %20, %19 : vector<8x32xf32>
    %22 = arith.divf %20, %21 : vector<8x32xf32>
    %23 = vector.extract_strided_slice %16 {offsets = [0, 32], sizes = [8, 32], strides = [1, 1]} : vector<8x128xf32> to vector<8x32xf32>
    %24 = arith.negf %23 : vector<8x32xf32>
    %25 = math.exp %24 : vector<8x32xf32>
    %cst_17 = arith.constant 1.000000e+00 : f32
    %26 = vector.broadcast %cst_17 : f32 to vector<8x32xf32>
    %27 = arith.addf %26, %25 : vector<8x32xf32>
    %28 = arith.divf %26, %27 : vector<8x32xf32>
    %29 = vector.extract_strided_slice %16 {offsets = [0, 64], sizes = [8, 32], strides = [1, 1]} : vector<8x128xf32> to vector<8x32xf32>
    %30 = math.tanh %29 : vector<8x32xf32>
    %31 = vector.extract_strided_slice %16 {offsets = [0, 96], sizes = [8, 32], strides = [1, 1]} : vector<8x128xf32> to vector<8x32xf32>
    %32 = arith.negf %31 : vector<8x32xf32>
    %33 = math.exp %32 : vector<8x32xf32>
    %cst_18 = arith.constant 1.000000e+00 : f32
    %34 = vector.broadcast %cst_18 : f32 to vector<8x32xf32>
    %35 = arith.addf %34, %33 : vector<8x32xf32>
    %36 = arith.divf %34, %35 : vector<8x32xf32>
    %37 = arith.mulf %28, %11 : vector<8x32xf32>
    %38 = arith.mulf %22, %30 : vector<8x32xf32>
    %39 = arith.addf %37, %38 : vector<8x32xf32>
    %40 = math.tanh %39 : vector<8x32xf32>
    %41 = arith.mulf %36, %40 : vector<8x32xf32>
    %42 = arith.index_cast %c0_i32 : i32 to index
    %c0_19 = arith.constant 0 : index
    %c0_20 = arith.constant 0 : index
    %43 = vector.load %arg5[%42, %c0_19, %c0_20] : memref<8x8x32xf32, #tpu.memory_space<vmem>>, vector<1x8x32xf32>
    %44 = vector.shape_cast %43 : vector<1x8x32xf32> to vector<8x32xf32>
    %45 = vector.shape_cast %41 : vector<8x32xf32> to vector<1x8x32xf32>
    tpu.vector_store %arg5[%42, %c0_19, %c0_20], %45 {strides = array<i32>} : memref<8x8x32xf32, #tpu.memory_space<vmem>>, vector<1x8x32xf32>,
    %c1_i32 = arith.constant 1 : i32
    %46 = arith.index_cast %c1_i32 : i32 to index
    %c0_21 = arith.constant 0 : index
    %c0_22 = arith.constant 0 : index
    %47 = vector.load %arg6[%46, %c0_21, %c0_22] : memref<8x8x128xf32, #tpu.memory_space<vmem>>, vector<1x8x128xf32>
    %48 = vector.shape_cast %47 : vector<1x8x128xf32> to vector<8x128xf32>
    %cst_23 = arith.constant dense<0.000000e+00> : vector<8x128xf32>
    %49 = tpu.matmul %41, %9, %cst_23 {dimension_numbers = #tpu.dot_dimension_numbers<[1], [0], [0], [1], [0, 0, 1, 1], [], []>} : vector<8x32xf32>, vector<32x128xf32>, vector<8x128xf32> -> vector<8x128xf32>
    %50 = arith.addf %48, %49 : vector<8x128xf32>
    %51 = vector.extract_strided_slice %50 {offsets = [0, 0], sizes = [8, 32], strides = [1, 1]} : vector<8x128xf32> to vector<8x32xf32>
    %52 = arith.negf %51 : vector<8x32xf32>
    %53 = math.exp %52 : vector<8x32xf32>
    %cst_24 = arith.constant 1.000000e+00 : f32
    %54 = vector.broadcast %cst_24 : f32 to vector<8x32xf32>
    %55 = arith.addf %54, %53 : vector<8x32xf32>
    %56 = arith.divf %54, %55 : vector<8x32xf32>
    %57 = vector.extract_strided_slice %50 {offsets = [0, 32], sizes = [8, 32], strides = [1, 1]} : vector<8x128xf32> to vector<8x32xf32>
    %58 = arith.negf %57 : vector<8x32xf32>
    %59 = math.exp %58 : vector<8x32xf32>
    %cst_25 = arith.constant 1.000000e+00 : f32
    %60 = vector.broadcast %cst_25 : f32 to vector<8x32xf32>
    %61 = arith.addf %60, %59 : vector<8x32xf32>
    %62 = arith.divf %60, %61 : vector<8x32xf32>
    %63 = vector.extract_strided_slice %50 {offsets = [0, 64], sizes = [8, 32], strides = [1, 1]} : vector<8x128xf32> to vector<8x32xf32>
    %64 = math.tanh %63 : vector<8x32xf32>
    %65 = vector.extract_strided_slice %50 {offsets = [0, 96], sizes = [8, 32], strides = [1, 1]} : vector<8x128xf32> to vector<8x32xf32>
    %66 = arith.negf %65 : vector<8x32xf32>
    %67 = math.exp %66 : vector<8x32xf32>
    %cst_26 = arith.constant 1.000000e+00 : f32
    %68 = vector.broadcast %cst_26 : f32 to vector<8x32xf32>
    %69 = arith.addf %68, %67 : vector<8x32xf32>
    %70 = arith.divf %68, %69 : vector<8x32xf32>
    %71 = arith.mulf %62, %39 : vector<8x32xf32>
    %72 = arith.mulf %56, %64 : vector<8x32xf32>
    %73 = arith.addf %71, %72 : vector<8x32xf32>
    %74 = math.tanh %73 : vector<8x32xf32>
    %75 = arith.mulf %70, %74 : vector<8x32xf32>
    %76 = arith.index_cast %c1_i32 : i32 to index
    %c0_27 = arith.constant 0 : index
    %c0_28 = arith.constant 0 : index
    %77 = vector.load %arg5[%76, %c0_27, %c0_28] : memref<8x8x32xf32, #tpu.memory_space<vmem>>, vector<1x8x32xf32>
    %78 = vector.shape_cast %77 : vector<1x8x32xf32> to vector<8x32xf32>
    %79 = vector.shape_cast %75 : vector<8x32xf32> to vector<1x8x32xf32>
    tpu.vector_store %arg5[%76, %c0_27, %c0_28], %79 {strides = array<i32>} : memref<8x8x32xf32, #tpu.memory_space<vmem>>, vector<1x8x32xf32>,
    %c2_i32 = arith.constant 2 : i32
    %80 = arith.index_cast %c2_i32 : i32 to index
    %c0_29 = arith.constant 0 : index
    %c0_30 = arith.constant 0 : index
    %81 = vector.load %arg6[%80, %c0_29, %c0_30] : memref<8x8x128xf32, #tpu.memory_space<vmem>>, vector<1x8x128xf32>
    %82 = vector.shape_cast %81 : vector<1x8x128xf32> to vector<8x128xf32>
    %cst_31 = arith.constant dense<0.000000e+00> : vector<8x128xf32>
    %83 = tpu.matmul %75, %9, %cst_31 {dimension_numbers = #tpu.dot_dimension_numbers<[1], [0], [0], [1], [0, 0, 1, 1], [], []>} : vector<8x32xf32>, vector<32x128xf32>, vector<8x128xf32> -> vector<8x128xf32>
    %84 = arith.addf %82, %83 : vector<8x128xf32>
    %85 = vector.extract_strided_slice %84 {offsets = [0, 0], sizes = [8, 32], strides = [1, 1]} : vector<8x128xf32> to vector<8x32xf32>
    %86 = arith.negf %85 : vector<8x32xf32>
    %87 = math.exp %86 : vector<8x32xf32>
    %cst_32 = arith.constant 1.000000e+00 : f32
    %88 = vector.broadcast %cst_32 : f32 to vector<8x32xf32>
    %89 = arith.addf %88, %87 : vector<8x32xf32>
    %90 = arith.divf %88, %89 : vector<8x32xf32>
    %91 = vector.extract_strided_slice %84 {offsets = [0, 32], sizes = [8, 32], strides = [1, 1]} : vector<8x128xf32> to vector<8x32xf32>
    %92 = arith.negf %91 : vector<8x32xf32>
    %93 = math.exp %92 : vector<8x32xf32>
    %cst_33 = arith.constant 1.000000e+00 : f32
    %94 = vector.broadcast %cst_33 : f32 to vector<8x32xf32>
    %95 = arith.addf %94, %93 : vector<8x32xf32>
    %96 = arith.divf %94, %95 : vector<8x32xf32>
    %97 = vector.extract_strided_slice %84 {offsets = [0, 64], sizes = [8, 32], strides = [1, 1]} : vector<8x128xf32> to vector<8x32xf32>
    %98 = math.tanh %97 : vector<8x32xf32>
    %99 = vector.extract_strided_slice %84 {offsets = [0, 96], sizes = [8, 32], strides = [1, 1]} : vector<8x128xf32> to vector<8x32xf32>
    %100 = arith.negf %99 : vector<8x32xf32>
    %101 = math.exp %100 : vector<8x32xf32>
    %cst_34 = arith.constant 1.000000e+00 : f32
    %102 = vector.broadcast %cst_34 : f32 to vector<8x32xf32>
    %103 = arith.addf %102, %101 : vector<8x32xf32>
    %104 = arith.divf %102, %103 : vector<8x32xf32>
    %105 = arith.mulf %96, %73 : vector<8x32xf32>
    %106 = arith.mulf %90, %98 : vector<8x32xf32>
    %107 = arith.addf %105, %106 : vector<8x32xf32>
    %108 = math.tanh %107 : vector<8x32xf32>
    %109 = arith.mulf %104, %108 : vector<8x32xf32>
    %110 = arith.index_cast %c2_i32 : i32 to index
    %c0_35 = arith.constant 0 : index
    %c0_36 = arith.constant 0 : index
    %111 = vector.load %arg5[%110, %c0_35, %c0_36] : memref<8x8x32xf32, #tpu.memory_space<vmem>>, vector<1x8x32xf32>
    %112 = vector.shape_cast %111 : vector<1x8x32xf32> to vector<8x32xf32>
    %113 = vector.shape_cast %109 : vector<8x32xf32> to vector<1x8x32xf32>
    tpu.vector_store %arg5[%110, %c0_35, %c0_36], %113 {strides = array<i32>} : memref<8x8x32xf32, #tpu.memory_space<vmem>>, vector<1x8x32xf32>,
    %c3_i32 = arith.constant 3 : i32
    %114 = arith.index_cast %c3_i32 : i32 to index
    %c0_37 = arith.constant 0 : index
    %c0_38 = arith.constant 0 : index
    %115 = vector.load %arg6[%114, %c0_37, %c0_38] : memref<8x8x128xf32, #tpu.memory_space<vmem>>, vector<1x8x128xf32>
    %116 = vector.shape_cast %115 : vector<1x8x128xf32> to vector<8x128xf32>
    %cst_39 = arith.constant dense<0.000000e+00> : vector<8x128xf32>
    %117 = tpu.matmul %109, %9, %cst_39 {dimension_numbers = #tpu.dot_dimension_numbers<[1], [0], [0], [1], [0, 0, 1, 1], [], []>} : vector<8x32xf32>, vector<32x128xf32>, vector<8x128xf32> -> vector<8x128xf32>
    %118 = arith.addf %116, %117 : vector<8x128xf32>
    %119 = vector.extract_strided_slice %118 {offsets = [0, 0], sizes = [8, 32], strides = [1, 1]} : vector<8x128xf32> to vector<8x32xf32>
    %120 = arith.negf %119 : vector<8x32xf32>
    %121 = math.exp %120 : vector<8x32xf32>
    %cst_40 = arith.constant 1.000000e+00 : f32
    %122 = vector.broadcast %cst_40 : f32 to vector<8x32xf32>
    %123 = arith.addf %122, %121 : vector<8x32xf32>
    %124 = arith.divf %122, %123 : vector<8x32xf32>
    %125 = vector.extract_strided_slice %118 {offsets = [0, 32], sizes = [8, 32], strides = [1, 1]} : vector<8x128xf32> to vector<8x32xf32>
    %126 = arith.negf %125 : vector<8x32xf32>
    %127 = math.exp %126 : vector<8x32xf32>
    %cst_41 = arith.constant 1.000000e+00 : f32
    %128 = vector.broadcast %cst_41 : f32 to vector<8x32xf32>
    %129 = arith.addf %128, %127 : vector<8x32xf32>
    %130 = arith.divf %128, %129 : vector<8x32xf32>
    %131 = vector.extract_strided_slice %118 {offsets = [0, 64], sizes = [8, 32], strides = [1, 1]} : vector<8x128xf32> to vector<8x32xf32>
    %132 = math.tanh %131 : vector<8x32xf32>
    %133 = vector.extract_strided_slice %118 {offsets = [0, 96], sizes = [8, 32], strides = [1, 1]} : vector<8x128xf32> to vector<8x32xf32>
    %134 = arith.negf %133 : vector<8x32xf32>
    %135 = math.exp %134 : vector<8x32xf32>
    %cst_42 = arith.constant 1.000000e+00 : f32
    %136 = vector.broadcast %cst_42 : f32 to vector<8x32xf32>
    %137 = arith.addf %136, %135 : vector<8x32xf32>
    %138 = arith.divf %136, %137 : vector<8x32xf32>
    %139 = arith.mulf %130, %107 : vector<8x32xf32>
    %140 = arith.mulf %124, %132 : vector<8x32xf32>
    %141 = arith.addf %139, %140 : vector<8x32xf32>
    %142 = math.tanh %141 : vector<8x32xf32>
    %143 = arith.mulf %138, %142 : vector<8x32xf32>
    %144 = arith.index_cast %c3_i32 : i32 to index
    %c0_43 = arith.constant 0 : index
    %c0_44 = arith.constant 0 : index
    %145 = vector.load %arg5[%144, %c0_43, %c0_44] : memref<8x8x32xf32, #tpu.memory_space<vmem>>, vector<1x8x32xf32>
    %146 = vector.shape_cast %145 : vector<1x8x32xf32> to vector<8x32xf32>
    %147 = vector.shape_cast %143 : vector<8x32xf32> to vector<1x8x32xf32>
    tpu.vector_store %arg5[%144, %c0_43, %c0_44], %147 {strides = array<i32>} : memref<8x8x32xf32, #tpu.memory_space<vmem>>, vector<1x8x32xf32>,
    %c4_i32 = arith.constant 4 : i32
    %148 = arith.index_cast %c4_i32 : i32 to index
    %c0_45 = arith.constant 0 : index
    %c0_46 = arith.constant 0 : index
    %149 = vector.load %arg6[%148, %c0_45, %c0_46] : memref<8x8x128xf32, #tpu.memory_space<vmem>>, vector<1x8x128xf32>
    %150 = vector.shape_cast %149 : vector<1x8x128xf32> to vector<8x128xf32>
    %cst_47 = arith.constant dense<0.000000e+00> : vector<8x128xf32>
    %151 = tpu.matmul %143, %9, %cst_47 {dimension_numbers = #tpu.dot_dimension_numbers<[1], [0], [0], [1], [0, 0, 1, 1], [], []>} : vector<8x32xf32>, vector<32x128xf32>, vector<8x128xf32> -> vector<8x128xf32>
    %152 = arith.addf %150, %151 : vector<8x128xf32>
    %153 = vector.extract_strided_slice %152 {offsets = [0, 0], sizes = [8, 32], strides = [1, 1]} : vector<8x128xf32> to vector<8x32xf32>
    %154 = arith.negf %153 : vector<8x32xf32>
    %155 = math.exp %154 : vector<8x32xf32>
    %cst_48 = arith.constant 1.000000e+00 : f32
    %156 = vector.broadcast %cst_48 : f32 to vector<8x32xf32>
    %157 = arith.addf %156, %155 : vector<8x32xf32>
    %158 = arith.divf %156, %157 : vector<8x32xf32>
    %159 = vector.extract_strided_slice %152 {offsets = [0, 32], sizes = [8, 32], strides = [1, 1]} : vector<8x128xf32> to vector<8x32xf32>
    %160 = arith.negf %159 : vector<8x32xf32>
    %161 = math.exp %160 : vector<8x32xf32>
    %cst_49 = arith.constant 1.000000e+00 : f32
    %162 = vector.broadcast %cst_49 : f32 to vector<8x32xf32>
    %163 = arith.addf %162, %161 : vector<8x32xf32>
    %164 = arith.divf %162, %163 : vector<8x32xf32>
    %165 = vector.extract_strided_slice %152 {offsets = [0, 64], sizes = [8, 32], strides = [1, 1]} : vector<8x128xf32> to vector<8x32xf32>
    %166 = math.tanh %165 : vector<8x32xf32>
    %167 = vector.extract_strided_slice %152 {offsets = [0, 96], sizes = [8, 32], strides = [1, 1]} : vector<8x128xf32> to vector<8x32xf32>
    %168 = arith.negf %167 : vector<8x32xf32>
    %169 = math.exp %168 : vector<8x32xf32>
    %cst_50 = arith.constant 1.000000e+00 : f32
    %170 = vector.broadcast %cst_50 : f32 to vector<8x32xf32>
    %171 = arith.addf %170, %169 : vector<8x32xf32>
    %172 = arith.divf %170, %171 : vector<8x32xf32>
    %173 = arith.mulf %164, %141 : vector<8x32xf32>
    %174 = arith.mulf %158, %166 : vector<8x32xf32>
    %175 = arith.addf %173, %174 : vector<8x32xf32>
    %176 = math.tanh %175 : vector<8x32xf32>
    %177 = arith.mulf %172, %176 : vector<8x32xf32>
    %178 = arith.index_cast %c4_i32 : i32 to index
    %c0_51 = arith.constant 0 : index
    %c0_52 = arith.constant 0 : index
    %179 = vector.load %arg5[%178, %c0_51, %c0_52] : memref<8x8x32xf32, #tpu.memory_space<vmem>>, vector<1x8x32xf32>
    %180 = vector.shape_cast %179 : vector<1x8x32xf32> to vector<8x32xf32>
    %181 = vector.shape_cast %177 : vector<8x32xf32> to vector<1x8x32xf32>
    tpu.vector_store %arg5[%178, %c0_51, %c0_52], %181 {strides = array<i32>} : memref<8x8x32xf32, #tpu.memory_space<vmem>>, vector<1x8x32xf32>,
    %c5_i32 = arith.constant 5 : i32
    %182 = arith.index_cast %c5_i32 : i32 to index
    %c0_53 = arith.constant 0 : index
    %c0_54 = arith.constant 0 : index
    %183 = vector.load %arg6[%182, %c0_53, %c0_54] : memref<8x8x128xf32, #tpu.memory_space<vmem>>, vector<1x8x128xf32>
    %184 = vector.shape_cast %183 : vector<1x8x128xf32> to vector<8x128xf32>
    %cst_55 = arith.constant dense<0.000000e+00> : vector<8x128xf32>
    %185 = tpu.matmul %177, %9, %cst_55 {dimension_numbers = #tpu.dot_dimension_numbers<[1], [0], [0], [1], [0, 0, 1, 1], [], []>} : vector<8x32xf32>, vector<32x128xf32>, vector<8x128xf32> -> vector<8x128xf32>
    %186 = arith.addf %184, %185 : vector<8x128xf32>
    %187 = vector.extract_strided_slice %186 {offsets = [0, 0], sizes = [8, 32], strides = [1, 1]} : vector<8x128xf32> to vector<8x32xf32>
    %188 = arith.negf %187 : vector<8x32xf32>
    %189 = math.exp %188 : vector<8x32xf32>
    %cst_56 = arith.constant 1.000000e+00 : f32
    %190 = vector.broadcast %cst_56 : f32 to vector<8x32xf32>
    %191 = arith.addf %190, %189 : vector<8x32xf32>
    %192 = arith.divf %190, %191 : vector<8x32xf32>
    %193 = vector.extract_strided_slice %186 {offsets = [0, 32], sizes = [8, 32], strides = [1, 1]} : vector<8x128xf32> to vector<8x32xf32>
    %194 = arith.negf %193 : vector<8x32xf32>
    %195 = math.exp %194 : vector<8x32xf32>
    %cst_57 = arith.constant 1.000000e+00 : f32
    %196 = vector.broadcast %cst_57 : f32 to vector<8x32xf32>
    %197 = arith.addf %196, %195 : vector<8x32xf32>
    %198 = arith.divf %196, %197 : vector<8x32xf32>
    %199 = vector.extract_strided_slice %186 {offsets = [0, 64], sizes = [8, 32], strides = [1, 1]} : vector<8x128xf32> to vector<8x32xf32>
    %200 = math.tanh %199 : vector<8x32xf32>
    %201 = vector.extract_strided_slice %186 {offsets = [0, 96], sizes = [8, 32], strides = [1, 1]} : vector<8x128xf32> to vector<8x32xf32>
    %202 = arith.negf %201 : vector<8x32xf32>
    %203 = math.exp %202 : vector<8x32xf32>
    %cst_58 = arith.constant 1.000000e+00 : f32
    %204 = vector.broadcast %cst_58 : f32 to vector<8x32xf32>
    %205 = arith.addf %204, %203 : vector<8x32xf32>
    %206 = arith.divf %204, %205 : vector<8x32xf32>
    %207 = arith.mulf %198, %175 : vector<8x32xf32>
    %208 = arith.mulf %192, %200 : vector<8x32xf32>
    %209 = arith.addf %207, %208 : vector<8x32xf32>
    %210 = math.tanh %209 : vector<8x32xf32>
    %211 = arith.mulf %206, %210 : vector<8x32xf32>
    %212 = arith.index_cast %c5_i32 : i32 to index
    %c0_59 = arith.constant 0 : index
    %c0_60 = arith.constant 0 : index
    %213 = vector.load %arg5[%212, %c0_59, %c0_60] : memref<8x8x32xf32, #tpu.memory_space<vmem>>, vector<1x8x32xf32>
    %214 = vector.shape_cast %213 : vector<1x8x32xf32> to vector<8x32xf32>
    %215 = vector.shape_cast %211 : vector<8x32xf32> to vector<1x8x32xf32>
    tpu.vector_store %arg5[%212, %c0_59, %c0_60], %215 {strides = array<i32>} : memref<8x8x32xf32, #tpu.memory_space<vmem>>, vector<1x8x32xf32>,
    %c6_i32 = arith.constant 6 : i32
    %216 = arith.index_cast %c6_i32 : i32 to index
    %c0_61 = arith.constant 0 : index
    %c0_62 = arith.constant 0 : index
    %217 = vector.load %arg6[%216, %c0_61, %c0_62] : memref<8x8x128xf32, #tpu.memory_space<vmem>>, vector<1x8x128xf32>
    %218 = vector.shape_cast %217 : vector<1x8x128xf32> to vector<8x128xf32>
    %cst_63 = arith.constant dense<0.000000e+00> : vector<8x128xf32>
    %219 = tpu.matmul %211, %9, %cst_63 {dimension_numbers = #tpu.dot_dimension_numbers<[1], [0], [0], [1], [0, 0, 1, 1], [], []>} : vector<8x32xf32>, vector<32x128xf32>, vector<8x128xf32> -> vector<8x128xf32>
    %220 = arith.addf %218, %219 : vector<8x128xf32>
    %221 = vector.extract_strided_slice %220 {offsets = [0, 0], sizes = [8, 32], strides = [1, 1]} : vector<8x128xf32> to vector<8x32xf32>
    %222 = arith.negf %221 : vector<8x32xf32>
    %223 = math.exp %222 : vector<8x32xf32>
    %cst_64 = arith.constant 1.000000e+00 : f32
    %224 = vector.broadcast %cst_64 : f32 to vector<8x32xf32>
    %225 = arith.addf %224, %223 : vector<8x32xf32>
    %226 = arith.divf %224, %225 : vector<8x32xf32>
    %227 = vector.extract_strided_slice %220 {offsets = [0, 32], sizes = [8, 32], strides = [1, 1]} : vector<8x128xf32> to vector<8x32xf32>
    %228 = arith.negf %227 : vector<8x32xf32>
    %229 = math.exp %228 : vector<8x32xf32>
    %cst_65 = arith.constant 1.000000e+00 : f32
    %230 = vector.broadcast %cst_65 : f32 to vector<8x32xf32>
    %231 = arith.addf %230, %229 : vector<8x32xf32>
    %232 = arith.divf %230, %231 : vector<8x32xf32>
    %233 = vector.extract_strided_slice %220 {offsets = [0, 64], sizes = [8, 32], strides = [1, 1]} : vector<8x128xf32> to vector<8x32xf32>
    %234 = math.tanh %233 : vector<8x32xf32>
    %235 = vector.extract_strided_slice %220 {offsets = [0, 96], sizes = [8, 32], strides = [1, 1]} : vector<8x128xf32> to vector<8x32xf32>
    %236 = arith.negf %235 : vector<8x32xf32>
    %237 = math.exp %236 : vector<8x32xf32>
    %cst_66 = arith.constant 1.000000e+00 : f32
    %238 = vector.broadcast %cst_66 : f32 to vector<8x32xf32>
    %239 = arith.addf %238, %237 : vector<8x32xf32>
    %240 = arith.divf %238, %239 : vector<8x32xf32>
    %241 = arith.mulf %232, %209 : vector<8x32xf32>
    %242 = arith.mulf %226, %234 : vector<8x32xf32>
    %243 = arith.addf %241, %242 : vector<8x32xf32>
    %244 = math.tanh %243 : vector<8x32xf32>
    %245 = arith.mulf %240, %244 : vector<8x32xf32>
    %246 = arith.index_cast %c6_i32 : i32 to index
    %c0_67 = arith.constant 0 : index
    %c0_68 = arith.constant 0 : index
    %247 = vector.load %arg5[%246, %c0_67, %c0_68] : memref<8x8x32xf32, #tpu.memory_space<vmem>>, vector<1x8x32xf32>
    %248 = vector.shape_cast %247 : vector<1x8x32xf32> to vector<8x32xf32>
    %249 = vector.shape_cast %245 : vector<8x32xf32> to vector<1x8x32xf32>
    tpu.vector_store %arg5[%246, %c0_67, %c0_68], %249 {strides = array<i32>} : memref<8x8x32xf32, #tpu.memory_space<vmem>>, vector<1x8x32xf32>,
    %c7_i32 = arith.constant 7 : i32
    %250 = arith.index_cast %c7_i32 : i32 to index
    %c0_69 = arith.constant 0 : index
    %c0_70 = arith.constant 0 : index
    %251 = vector.load %arg6[%250, %c0_69, %c0_70] : memref<8x8x128xf32, #tpu.memory_space<vmem>>, vector<1x8x128xf32>
    %252 = vector.shape_cast %251 : vector<1x8x128xf32> to vector<8x128xf32>
    %cst_71 = arith.constant dense<0.000000e+00> : vector<8x128xf32>
    %253 = tpu.matmul %245, %9, %cst_71 {dimension_numbers = #tpu.dot_dimension_numbers<[1], [0], [0], [1], [0, 0, 1, 1], [], []>} : vector<8x32xf32>, vector<32x128xf32>, vector<8x128xf32> -> vector<8x128xf32>
    %254 = arith.addf %252, %253 : vector<8x128xf32>
    %255 = vector.extract_strided_slice %254 {offsets = [0, 0], sizes = [8, 32], strides = [1, 1]} : vector<8x128xf32> to vector<8x32xf32>
    %256 = arith.negf %255 : vector<8x32xf32>
    %257 = math.exp %256 : vector<8x32xf32>
    %cst_72 = arith.constant 1.000000e+00 : f32
    %258 = vector.broadcast %cst_72 : f32 to vector<8x32xf32>
    %259 = arith.addf %258, %257 : vector<8x32xf32>
    %260 = arith.divf %258, %259 : vector<8x32xf32>
    %261 = vector.extract_strided_slice %254 {offsets = [0, 32], sizes = [8, 32], strides = [1, 1]} : vector<8x128xf32> to vector<8x32xf32>
    %262 = arith.negf %261 : vector<8x32xf32>
    %263 = math.exp %262 : vector<8x32xf32>
    %cst_73 = arith.constant 1.000000e+00 : f32
    %264 = vector.broadcast %cst_73 : f32 to vector<8x32xf32>
    %265 = arith.addf %264, %263 : vector<8x32xf32>
    %266 = arith.divf %264, %265 : vector<8x32xf32>
    %267 = vector.extract_strided_slice %254 {offsets = [0, 64], sizes = [8, 32], strides = [1, 1]} : vector<8x128xf32> to vector<8x32xf32>
    %268 = math.tanh %267 : vector<8x32xf32>
    %269 = vector.extract_strided_slice %254 {offsets = [0, 96], sizes = [8, 32], strides = [1, 1]} : vector<8x128xf32> to vector<8x32xf32>
    %270 = arith.negf %269 : vector<8x32xf32>
    %271 = math.exp %270 : vector<8x32xf32>
    %cst_74 = arith.constant 1.000000e+00 : f32
    %272 = vector.broadcast %cst_74 : f32 to vector<8x32xf32>
    %273 = arith.addf %272, %271 : vector<8x32xf32>
    %274 = arith.divf %272, %273 : vector<8x32xf32>
    %275 = arith.mulf %266, %243 : vector<8x32xf32>
    %276 = arith.mulf %260, %268 : vector<8x32xf32>
    %277 = arith.addf %275, %276 : vector<8x32xf32>
    %278 = math.tanh %277 : vector<8x32xf32>
    %279 = arith.mulf %274, %278 : vector<8x32xf32>
    %280 = arith.index_cast %c7_i32 : i32 to index
    %c0_75 = arith.constant 0 : index
    %c0_76 = arith.constant 0 : index
    %281 = vector.load %arg5[%280, %c0_75, %c0_76] : memref<8x8x32xf32, #tpu.memory_space<vmem>>, vector<1x8x32xf32>
    %282 = vector.shape_cast %281 : vector<1x8x32xf32> to vector<8x32xf32>
    %283 = vector.shape_cast %279 : vector<8x32xf32> to vector<1x8x32xf32>
    tpu.vector_store %arg5[%280, %c0_75, %c0_76], %283 {strides = array<i32>} : memref<8x8x32xf32, #tpu.memory_space<vmem>>, vector<1x8x32xf32>,
    %c8_i32 = arith.constant 8 : i32
    return
  }
  func.func @transform_0(%arg0: i32) -> (i32, i32, i32) {
    %c0_i32 = arith.constant 0 : i32
    %c0_i32_0 = arith.constant 0 : i32
    %c0_i32_1 = arith.constant 0 : i32
    %c0_i32_2 = arith.constant 0 : i32
    return %c0_i32, %c0_i32_0, %c0_i32_1 : i32, i32, i32
  }
  func.func @transform_1(%arg0: i32) -> (i32, i32) {
    %c0_i32 = arith.constant 0 : i32
    %c0_i32_0 = arith.constant 0 : i32
    %c0_i32_1 = arith.constant 0 : i32
    return %c0_i32, %c0_i32_0 : i32, i32
  }
  func.func @transform_2(%arg0: i32) -> (i32, i32) {
    %c0_i32 = arith.constant 0 : i32
    %c0_i32_0 = arith.constant 0 : i32
    %c0_i32_1 = arith.constant 0 : i32
    return %c0_i32, %c0_i32_0 : i32, i32
  }
  func.func @transform_3(%arg0: i32) -> (i32, i32) {
    %c0_i32 = arith.constant 0 : i32
    %c0_i32_0 = arith.constant 0 : i32
    %c0_i32_1 = arith.constant 0 : i32
    return %c0_i32, %c0_i32_0 : i32, i32
  }
  func.func @transform_4(%arg0: i32) -> (i32, i32, i32) {
    %c0_i32 = arith.constant 0 : i32
    %c0_i32_0 = arith.constant 0 : i32
    %c0_i32_1 = arith.constant 0 : i32
    %c0_i32_2 = arith.constant 0 : i32
    return %c0_i32, %c0_i32_0, %c0_i32_1 : i32, i32, i32
  }
}

</mosaic_0001>

<llo_original>
// kernel: tpu_custom_call.1
$region0: #{tpu_custom_call.1}
  #allocation0 [shape = 'u32[]', space=smem, size = 0x4, offset = 0x4, fixed_abs, tag = 'smem constant byte address 0x4 - core index']
  #allocation1 [shape = 'u32[144,128]{1,0:T(1,128)}', space=vmem, size = 0x12000, scoped, tag = 'internal scratch']
  #allocation2 [shape = 'f32[8,8,128]{2,1,0:T(8,128)}', space=vmem, size = 0x8000, scoped, tag = 'scratch operand']
  %s0 = inlined_call_operand.hbm [shape: f32[8,8,32], index: 0, kind: input, shape index: {}]
  %s1 = inlined_call_operand.hbm [shape: f32[32,128], index: 1, kind: input, shape index: {}]
  %s2 = inlined_call_operand.hbm [shape: f32[32,128], index: 2, kind: input, shape index: {}]
  %s3 = inlined_call_operand.vmem [shape: f32[1,128], index: 3, kind: input, shape index: {}]
  %s4 = inlined_call_operand.hbm [shape: f32[8,8,32], index: 4, kind: output, shape index: {}]
  %s5 = sld [smem:[#allocation0]]
  $region38: #{tpu_custom_call.1} parent=0
    _
  %s7 = ssub.s32 1, %s5
  %s8 = scalar_select 0, %s7, %s5
  $region1: #{tpu_custom_call.1} parent=0
    #allocation3 [shape = 'u8[32768]{0}', space=vmem, size = 0x8000, scoped, tag = 'input window, operand 0, single buffered']
    #allocation4 [shape = 's32[1]{0}', space=sflag, size = 0x4, scoped, tag = 'scoped memory for tpu_custom_call.1']
    #allocation5 [shape = 's32[1]{0}', space=sflag, size = 0x4, scoped, tag = 'scoped memory for tpu_custom_call.1']
    #allocation6 [shape = 'u8[16384]{0}', space=vmem, size = 0x4000, scoped, tag = 'input window, operand 1, single buffered']
    #allocation7 [shape = 's32[1]{0}', space=sflag, size = 0x4, scoped, tag = 'scoped memory for tpu_custom_call.1']
    #allocation8 [shape = 'u8[16384]{0}', space=vmem, size = 0x4000, scoped, tag = 'input window, operand 2, single buffered']
    #allocation9 [shape = 'u8[32768]{0}', space=vmem, size = 0x8000, scoped, tag = 'output window, operand 0, single buffered']
    %9 = vsyncpa [#allocation4], 0
    %10 = vsyncpa [#allocation7], 0
    %11 = vsyncpa [#allocation5], 0
    // Predicated region
    $region2: #{tpu_custom_call.1} parent=1 // pred_check
      _
    $region3: #{tpu_custom_call.1} parent=1 // pred_check_branch
      %13 = sbr.rel (0) target = $region5
    $region4: #{tpu_custom_call.1} parent=1 // pred_region
      %s15 = ssub.s32 1024, 1024
      %16 = vsyncadd [#allocation4], %s15
      %s17 = sshll.u32 [#allocation3], 4
      %s18 = int_to_ptr.vmem [resolvable:$true] %s17
      %23 = dma.hbm_to_vmem [thread:$0]  %s0, 1024, %s18, [#allocation4], 128, 128, 8
    $region5: #{tpu_custom_call.1} parent=1 // pred_fallthru
      _
    // Predicated region
    $region6: #{tpu_custom_call.1} parent=1 // pred_check
      _
    $region7: #{tpu_custom_call.1} parent=1 // pred_check_branch
      %25 = sbr.rel (0) target = $region9
    $region8: #{tpu_custom_call.1} parent=1 // pred_region
      %s27 = ssub.s32 512, 512
      %28 = vsyncadd [#allocation7], %s27
      %s29 = sshll.u32 [#allocation6], 4
      %s30 = int_to_ptr.vmem [resolvable:$true] %s29
      %35 = dma.hbm_to_vmem [thread:$0]  %s1, 512, %s30, [#allocation7], 128, 128, 8
    $region9: #{tpu_custom_call.1} parent=1 // pred_fallthru
      _
    // Predicated region
    $region10: #{tpu_custom_call.1} parent=1 // pred_check
      _
    $region11: #{tpu_custom_call.1} parent=1 // pred_check_branch
      %37 = sbr.rel (0) target = $region13
    $region12: #{tpu_custom_call.1} parent=1 // pred_region
      %s39 = ssub.s32 512, 512
      %40 = vsyncadd [#allocation7], %s39
      %s41 = sshll.u32 [#allocation8], 4
      %s42 = int_to_ptr.vmem [resolvable:$true] %s41
      %47 = dma.hbm_to_vmem [thread:$0]  %s2, 512, %s42, [#allocation7], 128, 128, 8
    $region13: #{tpu_custom_call.1} parent=1 // pred_fallthru
      _
    // Predicated region
    $region14: #{tpu_custom_call.1} parent=1 // pred_check
      _
    $region15: #{tpu_custom_call.1} parent=1 // pred_check_branch
      %49 = sbr.rel (0) target = $region17
    $region16: #{tpu_custom_call.1} parent=1 // pred_region
      _
    $region17: #{tpu_custom_call.1} parent=1 // pred_fallthru
      _
    // Predicated region
    $region18: #{tpu_custom_call.1} parent=1 // pred_check
      _
    $region19: #{tpu_custom_call.1} parent=1 // pred_check_branch
      %51 = sbr.rel (0) target = $region21
    $region20: #{tpu_custom_call.1} parent=1 // pred_region
      %52 = dma.done [#allocation4], 1024
    $region21: #{tpu_custom_call.1} parent=1 // pred_fallthru
      _
    // Predicated region
    $region22: #{tpu_custom_call.1} parent=1 // pred_check
      _
    $region23: #{tpu_custom_call.1} parent=1 // pred_check_branch
      %54 = sbr.rel (0) target = $region25
    $region24: #{tpu_custom_call.1} parent=1 // pred_region
      %55 = dma.done [#allocation7], 512
    $region25: #{tpu_custom_call.1} parent=1 // pred_fallthru
      _
    // Predicated region
    $region26: #{tpu_custom_call.1} parent=1 // pred_check
      _
    $region27: #{tpu_custom_call.1} parent=1 // pred_check_branch
      %57 = sbr.rel (0) target = $region29
    $region28: #{tpu_custom_call.1} parent=1 // pred_region
      %58 = dma.done [#allocation7], 512
    $region29: #{tpu_custom_call.1} parent=1 // pred_fallthru
      _
    %v59 = vld [vmem:[#allocation3] sm:$0xff]
    %v60 = vld [vmem:[#allocation3 + $0x8] sm:$0xff]
    %v61 = vld [vmem:[#allocation3 + $0x10] sm:$0xff]
    %v62 = vld [vmem:[#allocation3 + $0x18] sm:$0xff]
    %v63 = vld [vmem:[#allocation3 + $0x20] sm:$0xff]
    %v64 = vld [vmem:[#allocation3 + $0x28] sm:$0xff]
    %v65 = vld [vmem:[#allocation3 + $0x30] sm:$0xff]
    %v66 = vld [vmem:[#allocation3 + $0x38] sm:$0xff]
    %v67 = vld [vmem:[#allocation6] sm:$0xff]
    %v68 = vld [vmem:[#allocation6 + $0x8] sm:$0xff]
    %v69 = vld [vmem:[#allocation6 + $0x10] sm:$0xff]
    %v70 = vld [vmem:[#allocation6 + $0x18] sm:$0xff]
    %v71 = vld [vmem:[%s3] sm:$0x1]
    %v73 = vlaneseq
    %v74 = vshrl.u32 %v73, 7
    %v75 = vsub.s32 0, %v74
    %v76 = vrot.slane %v71, %v75
    %vm78 = vcmask 261120
    %v80 = vsel %vm78, %v59, 0
    %v83 = vsel %vm78, %v60, 0
    %v86 = vsel %vm78, %v61, 0
    %v89 = vsel %vm78, %v62, 0
    %v92 = vsel %vm78, %v63, 0
    %v95 = vsel %vm78, %v64, 0
    %v98 = vsel %vm78, %v65, 0
    %v101 = vsel %vm78, %v66, 0
    %103 = vmatprep.subr.mxu0 0.0
    %104 = vmatpush1.msra.mxu0 %v67
    %105 = vmatprep.subr.mxu0 0.0
    %106 = vmatpush1.msra.mxu0 %v68
    %107 = vmatprep.subr.mxu0 0.0
    %108 = vmatpush1.msra.mxu0 %v69
    %109 = vmatprep.subr.mxu0 0.0
    %110 = vmatpush1.msra.mxu0 %v70
    %111 = vmatprep.subr.mxu0 0.0
    %112 = vmatpush1.msra.mxu0 0.0
    %113 = vmatprep.subr.mxu0 0.0
    %114 = vmatpush1.msra.mxu0 0.0
    %115 = vmatprep.subr.mxu0 0.0
    %116 = vmatpush1.msra.mxu0 0.0
    %117 = vmatprep.subr.mxu0 0.0
    %118 = vmatpush1.msra.mxu0 0.0
    %119 = vmatprep.subr.mxu0 0.0
    %120 = vmatpush1.msra.mxu0 0.0
    %121 = vmatprep.subr.mxu0 0.0
    %122 = vmatpush1.msra.mxu0 0.0
    %123 = vmatprep.subr.mxu0 0.0
    %124 = vmatpush1.msra.mxu0 0.0
    %125 = vmatprep.subr.mxu0 0.0
    %126 = vmatpush1.msra.mxu0 0.0
    %127 = vmatprep.subr.mxu0 0.0
    %128 = vmatpush1.msra.mxu0 0.0
    %129 = vmatprep.subr.mxu0 0.0
    %130 = vmatpush1.msra.mxu0 0.0
    %131 = vmatprep.subr.mxu0 0.0
    %132 = vmatpush1.msra.mxu0 0.0
    %133 = vmatprep.subr.mxu0 0.0
    %134 = vmatpush1.msra.mxu0 0.0
    %135 = vmatprep.subr.mxu0 0.0
    %136 = vmatpush1.msra.mxu0 0.0
    %137 = vmatprep.subr.mxu0 0.0
    %138 = vmatpush1.msra.mxu0 0.0
    %139 = vmatprep.subr.mxu0 0.0
    %140 = vmatpush1.msra.mxu0 0.0
    %141 = vmatprep.subr.mxu0 0.0
    %142 = vmatpush1.msra.mxu0 0.0
    %143 = vmatprep.subr.mxu0 0.0
    %144 = vmatpush1.msra.mxu0 0.0
    %145 = vmatprep.subr.mxu0 0.0
    %146 = vmatpush1.msra.mxu0 0.0
    %147 = vmatprep.subr.mxu0 0.0
    %148 = vmatpush1.msra.mxu0 0.0
    %149 = vmatprep.subr.mxu0 0.0
    %150 = vmatpush1.msra.mxu0 0.0
    %151 = vmatprep.subr.mxu0 0.0
    %152 = vmatpush1.msra.mxu0 0.0
    %153 = vmatprep.subr.mxu0 0.0
    %154 = vmatpush1.msra.mxu0 0.0
    %155 = vmatprep.subr.mxu0 0.0
    %156 = vmatpush1.msra.mxu0 0.0
    %157 = vmatprep.subr.mxu0 0.0
    %158 = vmatpush1.msra.mxu0 0.0
    %159 = vmatprep.subr.mxu0 0.0
    %160 = vmatpush1.msra.mxu0 0.0
    %161 = vmatprep.subr.mxu0 0.0
    %162 = vmatpush1.msra.mxu0 0.0
    %163 = vmatprep.subr.mxu0 0.0
    %164 = vmatpush1.msra.mxu0 0.0
    %165 = vmatprep.subr.mxu0 0.0
    %166 = vmatpush1.msra.mxu0 0.0
    %167 = vmatprep.mubr.f32.mxu0 0.0
    %168 = vmatmul.mubr.f32.gmra.mrb[0].mxu0 %v80
    %v169 = vpop.f32.mrb[0].mxu0
    %v170 = vadd.f32 %v76, %v169
    %v171 = vpop.f32.mrb[0].mxu0
    %172 = vmatprep.mubr.f32.mxu0 0.0
    %173 = vmatmul.mubr.f32.gmra.mrb[0].mxu0 %v83
    %v174 = vpop.f32.mrb[0].mxu0
    %v175 = vadd.f32 %v76, %v174
    %v176 = vpop.f32.mrb[0].mxu0
    %177 = vmatprep.mubr.f32.mxu0 0.0
    %178 = vmatmul.mubr.f32.gmra.mrb[0].mxu0 %v86
    %v179 = vpop.f32.mrb[0].mxu0
    %v180 = vadd.f32 %v76, %v179
    %v181 = vpop.f32.mrb[0].mxu0
    %182 = vmatprep.mubr.f32.mxu0 0.0
    %183 = vmatmul.mubr.f32.gmra.mrb[0].mxu0 %v89
    %v184 = vpop.f32.mrb[0].mxu0
    %v185 = vadd.f32 %v76, %v184
    %v186 = vpop.f32.mrb[0].mxu0
    %187 = vmatprep.mubr.f32.mxu0 0.0
    %188 = vmatmul.mubr.f32.gmra.mrb[0].mxu0 %v92
    %v189 = vpop.f32.mrb[0].mxu0
    %v190 = vadd.f32 %v76, %v189
    %v191 = vpop.f32.mrb[0].mxu0
    %192 = vmatprep.mubr.f32.mxu0 0.0
    %193 = vmatmul.mubr.f32.gmra.mrb[0].mxu0 %v95
    %v194 = vpop.f32.mrb[0].mxu0
    %v195 = vadd.f32 %v76, %v194
    %v196 = vpop.f32.mrb[0].mxu0
    %197 = vmatprep.mubr.f32.mxu0 0.0
    %198 = vmatmul.mubr.f32.gmra.mrb[0].mxu0 %v98
    %v199 = vpop.f32.mrb[0].mxu0
    %v200 = vadd.f32 %v76, %v199
    %v201 = vpop.f32.mrb[0].mxu0
    %202 = vmatprep.mubr.f32.mxu0 0.0
    %203 = vmatmul.mubr.f32.gmra.mrb[0].mxu0 %v101
    %v204 = vpop.f32.mrb[0].mxu0
    %v205 = vadd.f32 %v76, %v204
    %v206 = vpop.f32.mrb[0].mxu0
    %207 = vdwg.mxu0
    %208 = vst [vmem:[#allocation2] sm:$0xff] %v170
    %209 = vst [vmem:[#allocation2 + $0x8] sm:$0xff] %v175
    %210 = vst [vmem:[#allocation2 + $0x10] sm:$0xff] %v180
    %211 = vst [vmem:[#allocation2 + $0x18] sm:$0xff] %v185
    %212 = vst [vmem:[#allocation2 + $0x20] sm:$0xff] %v190
    %213 = vst [vmem:[#allocation2 + $0x28] sm:$0xff] %v195
    %214 = vst [vmem:[#allocation2 + $0x30] sm:$0xff] %v200
    %215 = vst [vmem:[#allocation2 + $0x38] sm:$0xff] %v205
    %v216 = vld [vmem:[#allocation8] sm:$0xff]
    %v217 = vld [vmem:[#allocation8 + $0x8] sm:$0xff]
    %v218 = vld [vmem:[#allocation8 + $0x10] sm:$0xff]
    %v219 = vld [vmem:[#allocation8 + $0x18] sm:$0xff]
    %v220 = vld [vmem:[#allocation2] sm:$0xff]
    %v222 = vsel %vm78, 0.0, 0
    %224 = vmatprep.subr.mxu0 0.0
    %225 = vmatpush1.msra.mxu0 %v216
    %226 = vmatprep.subr.mxu0 0.0
    %227 = vmatpush1.msra.mxu0 %v217
    %228 = vmatprep.subr.mxu0 0.0
    %229 = vmatpush1.msra.mxu0 %v218
    %230 = vmatprep.subr.mxu0 0.0
    %231 = vmatpush1.msra.mxu0 %v219
    %232 = vmatprep.subr.mxu0 0.0
    %233 = vmatpush1.msra.mxu0 0.0
    %234 = vmatprep.subr.mxu0 0.0
    %235 = vmatpush1.msra.mxu0 0.0
    %236 = vmatprep.subr.mxu0 0.0
    %237 = vmatpush1.msra.mxu0 0.0
    %238 = vmatprep.subr.mxu0 0.0
    %239 = vmatpush1.msra.mxu0 0.0
    %240 = vmatprep.subr.mxu0 0.0
    %241 = vmatpush1.msra.mxu0 0.0
    %242 = vmatprep.subr.mxu0 0.0
    %243 = vmatpush1.msra.mxu0 0.0
    %244 = vmatprep.subr.mxu0 0.0
    %245 = vmatpush1.msra.mxu0 0.0
    %246 = vmatprep.subr.mxu0 0.0
    %247 = vmatpush1.msra.mxu0 0.0
    %248 = vmatprep.subr.mxu0 0.0
    %249 = vmatpush1.msra.mxu0 0.0
    %250 = vmatprep.subr.mxu0 0.0
    %251 = vmatpush1.msra.mxu0 0.0
    %252 = vmatprep.subr.mxu0 0.0
    %253 = vmatpush1.msra.mxu0 0.0
    %254 = vmatprep.subr.mxu0 0.0
    %255 = vmatpush1.msra.mxu0 0.0
    %256 = vmatprep.subr.mxu0 0.0
    %257 = vmatpush1.msra.mxu0 0.0
    %258 = vmatprep.subr.mxu0 0.0
    %259 = vmatpush1.msra.mxu0 0.0
    %260 = vmatprep.subr.mxu0 0.0
    %261 = vmatpush1.msra.mxu0 0.0
    %262 = vmatprep.subr.mxu0 0.0
    %263 = vmatpush1.msra.mxu0 0.0
    %264 = vmatprep.subr.mxu0 0.0
    %265 = vmatpush1.msra.mxu0 0.0
    %266 = vmatprep.subr.mxu0 0.0
    %267 = vmatpush1.msra.mxu0 0.0
    %268 = vmatprep.subr.mxu0 0.0
    %269 = vmatpush1.msra.mxu0 0.0
    %270 = vmatprep.subr.mxu0 0.0
    %271 = vmatpush1.msra.mxu0 0.0
    %272 = vmatprep.subr.mxu0 0.0
    %273 = vmatpush1.msra.mxu0 0.0
    %274 = vmatprep.subr.mxu0 0.0
    %275 = vmatpush1.msra.mxu0 0.0
    %276 = vmatprep.subr.mxu0 0.0
    %277 = vmatpush1.msra.mxu0 0.0
    %278 = vmatprep.subr.mxu0 0.0
    %279 = vmatpush1.msra.mxu0 0.0
    %280 = vmatprep.subr.mxu0 0.0
    %281 = vmatpush1.msra.mxu0 0.0
    %282 = vmatprep.subr.mxu0 0.0
    %283 = vmatpush1.msra.mxu0 0.0
    %284 = vmatprep.subr.mxu0 0.0
    %285 = vmatpush1.msra.mxu0 0.0
    %286 = vmatprep.subr.mxu0 0.0
    %287 = vmatpush1.msra.mxu0 0.0
    %288 = vmatprep.mubr.f32.mxu0 0.0
    %289 = vmatmul.mubr.f32.gmra.mrb[0].mxu0 %v222
    %v290 = vpop.f32.mrb[0].mxu0
    %v291 = vadd.f32 0.0, %v290
    %v292 = vpop.f32.mrb[0].mxu0
    %293 = vdwg.mxu0
    %v294 = vadd.f32 %v220, %v291
    %v295 = vxor.u32 %v294, 2147483648
    %v296 = vmul.f32 %v295, 1.442695
    %v297 = vpow.pop %v296
    %v298 = vadd.f32 %v297, 1.0
    %v299 = vrcp.pop %v298
    %v300 = vmul.f32 1.0, %v299
    %v301 = vtanh.pop %v294
    %v302 = vmul.f32 %v300, 0.0
    %304 = vrot.lane.b32.xlu0 %v301, 64
    %v305 = vpop.permute.xlu0 %304
    %v307 = vmul.f32 %v300, %v305
    %309 = vrot.lane.b32.xlu0 %v307, 32
    %v310 = vpop.permute.xlu0 %309
    %v312 = vadd.f32 %v302, %v310
    %v313 = vtanh.pop %v312
    %315 = vrot.lane.b32.xlu0 %v313, 64
    %v316 = vpop.permute.xlu0 %315
    %v318 = vmul.f32 %v300, %v316
    %320 = vrot.lane.b32.xlu0 %v318, 32
    %v321 = vpop.permute.xlu0 %320
    %323 = vst.msk [vmem:[#allocation9] sm:$0xff] %vm78, %v321
    %s324 = scalar_lea.vmem [#allocation2], 8
    %v325 = vld [vmem:[%s324] sm:$0xff]
    %v326 = vsel %vm78, %v321, 0
    %328 = vmatprep.subr.mxu0 0.0
    %329 = vmatpush1.msra.mxu0 %v216
    %330 = vmatprep.subr.mxu0 0.0
    %331 = vmatpush1.msra.mxu0 %v217
    %332 = vmatprep.subr.mxu0 0.0
    %333 = vmatpush1.msra.mxu0 %v218
    %334 = vmatprep.subr.mxu0 0.0
    %335 = vmatpush1.msra.mxu0 %v219
    %336 = vmatprep.subr.mxu0 0.0
    %337 = vmatpush1.msra.mxu0 0.0
    %338 = vmatprep.subr.mxu0 0.0
    %339 = vmatpush1.msra.mxu0 0.0
    %340 = vmatprep.subr.mxu0 0.0
    %341 = vmatpush1.msra.mxu0 0.0
    %342 = vmatprep.subr.mxu0 0.0
    %343 = vmatpush1.msra.mxu0 0.0
    %344 = vmatprep.subr.mxu0 0.0
    %345 = vmatpush1.msra.mxu0 0.0
    %346 = vmatprep.subr.mxu0 0.0
    %347 = vmatpush1.msra.mxu0 0.0
    %348 = vmatprep.subr.mxu0 0.0
    %349 = vmatpush1.msra.mxu0 0.0
    %350 = vmatprep.subr.mxu0 0.0
    %351 = vmatpush1.msra.mxu0 0.0
    %352 = vmatprep.subr.mxu0 0.0
    %353 = vmatpush1.msra.mxu0 0.0
    %354 = vmatprep.subr.mxu0 0.0
    %355 = vmatpush1.msra.mxu0 0.0
    %356 = vmatprep.subr.mxu0 0.0
    %357 = vmatpush1.msra.mxu0 0.0
    %358 = vmatprep.subr.mxu0 0.0
    %359 = vmatpush1.msra.mxu0 0.0
    %360 = vmatprep.subr.mxu0 0.0
    %361 = vmatpush1.msra.mxu0 0.0
    %362 = vmatprep.subr.mxu0 0.0
    %363 = vmatpush1.msra.mxu0 0.0
    %364 = vmatprep.subr.mxu0 0.0
    %365 = vmatpush1.msra.mxu0 0.0
    %366 = vmatprep.subr.mxu0 0.0
    %367 = vmatpush1.msra.mxu0 0.0
    %368 = vmatprep.subr.mxu0 0.0
    %369 = vmatpush1.msra.mxu0 0.0
    %370 = vmatprep.subr.mxu0 0.0
    %371 = vmatpush1.msra.mxu0 0.0
    %372 = vmatprep.subr.mxu0 0.0
    %373 = vmatpush1.msra.mxu0 0.0
    %374 = vmatprep.subr.mxu0 0.0
    %375 = vmatpush1.msra.mxu0 0.0
    %376 = vmatprep.subr.mxu0 0.0
    %377 = vmatpush1.msra.mxu0 0.0
    %378 = vmatprep.subr.mxu0 0.0
    %379 = vmatpush1.msra.mxu0 0.0
    %380 = vmatprep.subr.mxu0 0.0
    %381 = vmatpush1.msra.mxu0 0.0
    %382 = vmatprep.subr.mxu0 0.0
    %383 = vmatpush1.msra.mxu0 0.0
    %384 = vmatprep.subr.mxu0 0.0
    %385 = vmatpush1.msra.mxu0 0.0
    %386 = vmatprep.subr.mxu0 0.0
    %387 = vmatpush1.msra.mxu0 0.0
    %388 = vmatprep.subr.mxu0 0.0
    %389 = vmatpush1.msra.mxu0 0.0
    %390 = vmatprep.subr.mxu0 0.0
    %391 = vmatpush1.msra.mxu0 0.0
    %392 = vmatprep.mubr.f32.mxu0 0.0
    %393 = vmatmul.mubr.f32.gmra.mrb[0].mxu0 %v326
    %v394 = vpop.f32.mrb[0].mxu0
    %v395 = vadd.f32 0.0, %v394
    %v396 = vpop.f32.mrb[0].mxu0
    %397 = vdwg.mxu0
    %v398 = vadd.f32 %v325, %v395
    %v399 = vxor.u32 %v398, 2147483648
    %v400 = vmul.f32 %v399, 1.442695
    %v401 = vpow.pop %v400
    %v402 = vadd.f32 %v401, 1.0
    %v403 = vrcp.pop %v402
    %v404 = vmul.f32 1.0, %v403
    %v405 = vtanh.pop %v398
    %v406 = vmul.f32 %v404, %v312
    %408 = vrot.lane.b32.xlu0 %v405, 64
    %v409 = vpop.permute.xlu0 %408
    %v411 = vmul.f32 %v404, %v409
    %413 = vrot.lane.b32.xlu0 %v411, 32
    %v414 = vpop.permute.xlu0 %413
    %v416 = vadd.f32 %v406, %v414
    %v417 = vtanh.pop %v416
    %419 = vrot.lane.b32.xlu0 %v417, 64
    %v420 = vpop.permute.xlu0 %419
    %v422 = vmul.f32 %v404, %v420
    %424 = vrot.lane.b32.xlu0 %v422, 32
    %v425 = vpop.permute.xlu0 %424
    %s427 = scalar_lea.vmem [#allocation9], 8
    %428 = vst.msk [vmem:[%s427] sm:$0xff] %vm78, %v425
    %s429 = scalar_lea.vmem [#allocation2], 16
    %v430 = vld [vmem:[%s429] sm:$0xff]
    %v431 = vsel %vm78, %v425, 0
    %433 = vmatprep.subr.mxu0 0.0
    %434 = vmatpush1.msra.mxu0 %v216
    %435 = vmatprep.subr.mxu0 0.0
    %436 = vmatpush1.msra.mxu0 %v217
    %437 = vmatprep.subr.mxu0 0.0
    %438 = vmatpush1.msra.mxu0 %v218
    %439 = vmatprep.subr.mxu0 0.0
    %440 = vmatpush1.msra.mxu0 %v219
    %441 = vmatprep.subr.mxu0 0.0
    %442 = vmatpush1.msra.mxu0 0.0
    %443 = vmatprep.subr.mxu0 0.0
    %444 = vmatpush1.msra.mxu0 0.0
    %445 = vmatprep.subr.mxu0 0.0
    %446 = vmatpush1.msra.mxu0 0.0
    %447 = vmatprep.subr.mxu0 0.0
    %448 = vmatpush1.msra.mxu0 0.0
    %449 = vmatprep.subr.mxu0 0.0
    %450 = vmatpush1.msra.mxu0 0.0
    %451 = vmatprep.subr.mxu0 0.0
    %452 = vmatpush1.msra.mxu0 0.0
    %453 = vmatprep.subr.mxu0 0.0
    %454 = vmatpush1.msra.mxu0 0.0
    %455 = vmatprep.subr.mxu0 0.0
    %456 = vmatpush1.msra.mxu0 0.0
    %457 = vmatprep.subr.mxu0 0.0
    %458 = vmatpush1.msra.mxu0 0.0
    %459 = vmatprep.subr.mxu0 0.0
    %460 = vmatpush1.msra.mxu0 0.0
    %461 = vmatprep.subr.mxu0 0.0
    %462 = vmatpush1.msra.mxu0 0.0
    %463 = vmatprep.subr.mxu0 0.0
    %464 = vmatpush1.msra.mxu0 0.0
    %465 = vmatprep.subr.mxu0 0.0
    %466 = vmatpush1.msra.mxu0 0.0
    %467 = vmatprep.subr.mxu0 0.0
    %468 = vmatpush1.msra.mxu0 0.0
    %469 = vmatprep.subr.mxu0 0.0
    %470 = vmatpush1.msra.mxu0 0.0
    %471 = vmatprep.subr.mxu0 0.0
    %472 = vmatpush1.msra.mxu0 0.0
    %473 = vmatprep.subr.mxu0 0.0
    %474 = vmatpush1.msra.mxu0 0.0
    %475 = vmatprep.subr.mxu0 0.0
    %476 = vmatpush1.msra.mxu0 0.0
    %477 = vmatprep.subr.mxu0 0.0
    %478 = vmatpush1.msra.mxu0 0.0
    %479 = vmatprep.subr.mxu0 0.0
    %480 = vmatpush1.msra.mxu0 0.0
    %481 = vmatprep.subr.mxu0 0.0
    %482 = vmatpush1.msra.mxu0 0.0
    %483 = vmatprep.subr.mxu0 0.0
    %484 = vmatpush1.msra.mxu0 0.0
    %485 = vmatprep.subr.mxu0 0.0
    %486 = vmatpush1.msra.mxu0 0.0
    %487 = vmatprep.subr.mxu0 0.0
    %488 = vmatpush1.msra.mxu0 0.0
    %489 = vmatprep.subr.mxu0 0.0
    %490 = vmatpush1.msra.mxu0 0.0
    %491 = vmatprep.subr.mxu0 0.0
    %492 = vmatpush1.msra.mxu0 0.0
    %493 = vmatprep.subr.mxu0 0.0
    %494 = vmatpush1.msra.mxu0 0.0
    %495 = vmatprep.subr.mxu0 0.0
    %496 = vmatpush1.msra.mxu0 0.0
    %497 = vmatprep.mubr.f32.mxu0 0.0
    %498 = vmatmul.mubr.f32.gmra.mrb[0].mxu0 %v431
    %v499 = vpop.f32.mrb[0].mxu0
    %v500 = vadd.f32 0.0, %v499
    %v501 = vpop.f32.mrb[0].mxu0
    %502 = vdwg.mxu0
    %v503 = vadd.f32 %v430, %v500
    %v504 = vxor.u32 %v503, 2147483648
    %v505 = vmul.f32 %v504, 1.442695
    %v506 = vpow.pop %v505
    %v507 = vadd.f32 %v506, 1.0
    %v508 = vrcp.pop %v507
    %v509 = vmul.f32 1.0, %v508
    %v510 = vtanh.pop %v503
    %v511 = vmul.f32 %v509, %v416
    %513 = vrot.lane.b32.xlu0 %v510, 64
    %v514 = vpop.permute.xlu0 %513
    %v516 = vmul.f32 %v509, %v514
    %518 = vrot.lane.b32.xlu0 %v516, 32
    %v519 = vpop.permute.xlu0 %518
    %v521 = vadd.f32 %v511, %v519
    %v522 = vtanh.pop %v521
    %524 = vrot.lane.b32.xlu0 %v522, 64
    %v525 = vpop.permute.xlu0 %524
    %v527 = vmul.f32 %v509, %v525
    %529 = vrot.lane.b32.xlu0 %v527, 32
    %v530 = vpop.permute.xlu0 %529
    %s532 = scalar_lea.vmem [#allocation9], 16
    %533 = vst.msk [vmem:[%s532] sm:$0xff] %vm78, %v530
    %s534 = scalar_lea.vmem [#allocation2], 24
    %v535 = vld [vmem:[%s534] sm:$0xff]
    %v536 = vsel %vm78, %v530, 0
    %538 = vmatprep.subr.mxu0 0.0
    %539 = vmatpush1.msra.mxu0 %v216
    %540 = vmatprep.subr.mxu0 0.0
    %541 = vmatpush1.msra.mxu0 %v217
    %542 = vmatprep.subr.mxu0 0.0
    %543 = vmatpush1.msra.mxu0 %v218
    %544 = vmatprep.subr.mxu0 0.0
    %545 = vmatpush1.msra.mxu0 %v219
    %546 = vmatprep.subr.mxu0 0.0
    %547 = vmatpush1.msra.mxu0 0.0
    %548 = vmatprep.subr.mxu0 0.0
    %549 = vmatpush1.msra.mxu0 0.0
    %550 = vmatprep.subr.mxu0 0.0
    %551 = vmatpush1.msra.mxu0 0.0
    %552 = vmatprep.subr.mxu0 0.0
    %553 = vmatpush1.msra.mxu0 0.0
    %554 = vmatprep.subr.mxu0 0.0
    %555 = vmatpush1.msra.mxu0 0.0
    %556 = vmatprep.subr.mxu0 0.0
    %557 = vmatpush1.msra.mxu0 0.0
    %558 = vmatprep.subr.mxu0 0.0
    %559 = vmatpush1.msra.mxu0 0.0
    %560 = vmatprep.subr.mxu0 0.0
    %561 = vmatpush1.msra.mxu0 0.0
    %562 = vmatprep.subr.mxu0 0.0
    %563 = vmatpush1.msra.mxu0 0.0
    %564 = vmatprep.subr.mxu0 0.0
    %565 = vmatpush1.msra.mxu0 0.0
    %566 = vmatprep.subr.mxu0 0.0
    %567 = vmatpush1.msra.mxu0 0.0
    %568 = vmatprep.subr.mxu0 0.0
    %569 = vmatpush1.msra.mxu0 0.0
    %570 = vmatprep.subr.mxu0 0.0
    %571 = vmatpush1.msra.mxu0 0.0
    %572 = vmatprep.subr.mxu0 0.0
    %573 = vmatpush1.msra.mxu0 0.0
    %574 = vmatprep.subr.mxu0 0.0
    %575 = vmatpush1.msra.mxu0 0.0
    %576 = vmatprep.subr.mxu0 0.0
    %577 = vmatpush1.msra.mxu0 0.0
    %578 = vmatprep.subr.mxu0 0.0
    %579 = vmatpush1.msra.mxu0 0.0
    %580 = vmatprep.subr.mxu0 0.0
    %581 = vmatpush1.msra.mxu0 0.0
    %582 = vmatprep.subr.mxu0 0.0
    %583 = vmatpush1.msra.mxu0 0.0
    %584 = vmatprep.subr.mxu0 0.0
    %585 = vmatpush1.msra.mxu0 0.0
    %586 = vmatprep.subr.mxu0 0.0
    %587 = vmatpush1.msra.mxu0 0.0
    %588 = vmatprep.subr.mxu0 0.0
    %589 = vmatpush1.msra.mxu0 0.0
    %590 = vmatprep.subr.mxu0 0.0
    %591 = vmatpush1.msra.mxu0 0.0
    %592 = vmatprep.subr.mxu0 0.0
    %593 = vmatpush1.msra.mxu0 0.0
    %594 = vmatprep.subr.mxu0 0.0
    %595 = vmatpush1.msra.mxu0 0.0
    %596 = vmatprep.subr.mxu0 0.0
    %597 = vmatpush1.msra.mxu0 0.0
    %598 = vmatprep.subr.mxu0 0.0
    %599 = vmatpush1.msra.mxu0 0.0
    %600 = vmatprep.subr.mxu0 0.0
    %601 = vmatpush1.msra.mxu0 0.0
    %602 = vmatprep.mubr.f32.mxu0 0.0
    %603 = vmatmul.mubr.f32.gmra.mrb[0].mxu0 %v536
    %v604 = vpop.f32.mrb[0].mxu0
    %v605 = vadd.f32 0.0, %v604
    %v606 = vpop.f32.mrb[0].mxu0
    %607 = vdwg.mxu0
    %v608 = vadd.f32 %v535, %v605
    %v609 = vxor.u32 %v608, 2147483648
    %v610 = vmul.f32 %v609, 1.442695
    %v611 = vpow.pop %v610
    %v612 = vadd.f32 %v611, 1.0
    %v613 = vrcp.pop %v612
    %v614 = vmul.f32 1.0, %v613
    %v615 = vtanh.pop %v608
    %v616 = vmul.f32 %v614, %v521
    %618 = vrot.lane.b32.xlu0 %v615, 64
    %v619 = vpop.permute.xlu0 %618
    %v621 = vmul.f32 %v614, %v619
    %623 = vrot.lane.b32.xlu0 %v621, 32
    %v624 = vpop.permute.xlu0 %623
    %v626 = vadd.f32 %v616, %v624
    %v627 = vtanh.pop %v626
    %629 = vrot.lane.b32.xlu0 %v627, 64
    %v630 = vpop.permute.xlu0 %629
    %v632 = vmul.f32 %v614, %v630
    %634 = vrot.lane.b32.xlu0 %v632, 32
    %v635 = vpop.permute.xlu0 %634
    %s637 = scalar_lea.vmem [#allocation9], 24
    %638 = vst.msk [vmem:[%s637] sm:$0xff] %vm78, %v635
    %s639 = scalar_lea.vmem [#allocation2], 32
    %v640 = vld [vmem:[%s639] sm:$0xff]
    %v641 = vsel %vm78, %v635, 0
    %643 = vmatprep.subr.mxu0 0.0
    %644 = vmatpush1.msra.mxu0 %v216
    %645 = vmatprep.subr.mxu0 0.0
    %646 = vmatpush1.msra.mxu0 %v217
    %647 = vmatprep.subr.mxu0 0.0
    %648 = vmatpush1.msra.mxu0 %v218
    %649 = vmatprep.subr.mxu0 0.0
    %650 = vmatpush1.msra.mxu0 %v219
    %651 = vmatprep.subr.mxu0 0.0
    %652 = vmatpush1.msra.mxu0 0.0
    %653 = vmatprep.subr.mxu0 0.0
    %654 = vmatpush1.msra.mxu0 0.0
    %655 = vmatprep.subr.mxu0 0.0
    %656 = vmatpush1.msra.mxu0 0.0
    %657 = vmatprep.subr.mxu0 0.0
    %658 = vmatpush1.msra.mxu0 0.0
    %659 = vmatprep.subr.mxu0 0.0
    %660 = vmatpush1.msra.mxu0 0.0
    %661 = vmatprep.subr.mxu0 0.0
    %662 = vmatpush1.msra.mxu0 0.0
    %663 = vmatprep.subr.mxu0 0.0
    %664 = vmatpush1.msra.mxu0 0.0
    %665 = vmatprep.subr.mxu0 0.0
    %666 = vmatpush1.msra.mxu0 0.0
    %667 = vmatprep.subr.mxu0 0.0
    %668 = vmatpush1.msra.mxu0 0.0
    %669 = vmatprep.subr.mxu0 0.0
    %670 = vmatpush1.msra.mxu0 0.0
    %671 = vmatprep.subr.mxu0 0.0
    %672 = vmatpush1.msra.mxu0 0.0
    %673 = vmatprep.subr.mxu0 0.0
    %674 = vmatpush1.msra.mxu0 0.0
    %675 = vmatprep.subr.mxu0 0.0
    %676 = vmatpush1.msra.mxu0 0.0
    %677 = vmatprep.subr.mxu0 0.0
    %678 = vmatpush1.msra.mxu0 0.0
    %679 = vmatprep.subr.mxu0 0.0
    %680 = vmatpush1.msra.mxu0 0.0
    %681 = vmatprep.subr.mxu0 0.0
    %682 = vmatpush1.msra.mxu0 0.0
    %683 = vmatprep.subr.mxu0 0.0
    %684 = vmatpush1.msra.mxu0 0.0
    %685 = vmatprep.subr.mxu0 0.0
    %686 = vmatpush1.msra.mxu0 0.0
    %687 = vmatprep.subr.mxu0 0.0
    %688 = vmatpush1.msra.mxu0 0.0
    %689 = vmatprep.subr.mxu0 0.0
    %690 = vmatpush1.msra.mxu0 0.0
    %691 = vmatprep.subr.mxu0 0.0
    %692 = vmatpush1.msra.mxu0 0.0
    %693 = vmatprep.subr.mxu0 0.0
    %694 = vmatpush1.msra.mxu0 0.0
    %695 = vmatprep.subr.mxu0 0.0
    %696 = vmatpush1.msra.mxu0 0.0
    %697 = vmatprep.subr.mxu0 0.0
    %698 = vmatpush1.msra.mxu0 0.0
    %699 = vmatprep.subr.mxu0 0.0
    %700 = vmatpush1.msra.mxu0 0.0
    %701 = vmatprep.subr.mxu0 0.0
    %702 = vmatpush1.msra.mxu0 0.0
    %703 = vmatprep.subr.mxu0 0.0
    %704 = vmatpush1.msra.mxu0 0.0
    %705 = vmatprep.subr.mxu0 0.0
    %706 = vmatpush1.msra.mxu0 0.0
    %707 = vmatprep.mubr.f32.mxu0 0.0
    %708 = vmatmul.mubr.f32.gmra.mrb[0].mxu0 %v641
    %v709 = vpop.f32.mrb[0].mxu0
    %v710 = vadd.f32 0.0, %v709
    %v711 = vpop.f32.mrb[0].mxu0
    %712 = vdwg.mxu0
    %v713 = vadd.f32 %v640, %v710
    %v714 = vxor.u32 %v713, 2147483648
    %v715 = vmul.f32 %v714, 1.442695
    %v716 = vpow.pop %v715
    %v717 = vadd.f32 %v716, 1.0
    %v718 = vrcp.pop %v717
    %v719 = vmul.f32 1.0, %v718
    %v720 = vtanh.pop %v713
    %v721 = vmul.f32 %v719, %v626
    %723 = vrot.lane.b32.xlu0 %v720, 64
    %v724 = vpop.permute.xlu0 %723
    %v726 = vmul.f32 %v719, %v724
    %728 = vrot.lane.b32.xlu0 %v726, 32
    %v729 = vpop.permute.xlu0 %728
    %v731 = vadd.f32 %v721, %v729
    %v732 = vtanh.pop %v731
    %734 = vrot.lane.b32.xlu0 %v732, 64
    %v735 = vpop.permute.xlu0 %734
    %v737 = vmul.f32 %v719, %v735
    %739 = vrot.lane.b32.xlu0 %v737, 32
    %v740 = vpop.permute.xlu0 %739
    %s742 = scalar_lea.vmem [#allocation9], 32
    %743 = vst.msk [vmem:[%s742] sm:$0xff] %vm78, %v740
    %s744 = scalar_lea.vmem [#allocation2], 40
    %v745 = vld [vmem:[%s744] sm:$0xff]
    %v746 = vsel %vm78, %v740, 0
    %748 = vmatprep.subr.mxu0 0.0
    %749 = vmatpush1.msra.mxu0 %v216
    %750 = vmatprep.subr.mxu0 0.0
    %751 = vmatpush1.msra.mxu0 %v217
    %752 = vmatprep.subr.mxu0 0.0
    %753 = vmatpush1.msra.mxu0 %v218
    %754 = vmatprep.subr.mxu0 0.0
    %755 = vmatpush1.msra.mxu0 %v219
    %756 = vmatprep.subr.mxu0 0.0
    %757 = vmatpush1.msra.mxu0 0.0
    %758 = vmatprep.subr.mxu0 0.0
    %759 = vmatpush1.msra.mxu0 0.0
    %760 = vmatprep.subr.mxu0 0.0
    %761 = vmatpush1.msra.mxu0 0.0
    %762 = vmatprep.subr.mxu0 0.0
    %763 = vmatpush1.msra.mxu0 0.0
    %764 = vmatprep.subr.mxu0 0.0
    %765 = vmatpush1.msra.mxu0 0.0
    %766 = vmatprep.subr.mxu0 0.0
    %767 = vmatpush1.msra.mxu0 0.0
    %768 = vmatprep.subr.mxu0 0.0
    %769 = vmatpush1.msra.mxu0 0.0
    %770 = vmatprep.subr.mxu0 0.0
    %771 = vmatpush1.msra.mxu0 0.0
    %772 = vmatprep.subr.mxu0 0.0
    %773 = vmatpush1.msra.mxu0 0.0
    %774 = vmatprep.subr.mxu0 0.0
    %775 = vmatpush1.msra.mxu0 0.0
    %776 = vmatprep.subr.mxu0 0.0
    %777 = vmatpush1.msra.mxu0 0.0
    %778 = vmatprep.subr.mxu0 0.0
    %779 = vmatpush1.msra.mxu0 0.0
    %780 = vmatprep.subr.mxu0 0.0
    %781 = vmatpush1.msra.mxu0 0.0
    %782 = vmatprep.subr.mxu0 0.0
    %783 = vmatpush1.msra.mxu0 0.0
    %784 = vmatprep.subr.mxu0 0.0
    %785 = vmatpush1.msra.mxu0 0.0
    %786 = vmatprep.subr.mxu0 0.0
    %787 = vmatpush1.msra.mxu0 0.0
    %788 = vmatprep.subr.mxu0 0.0
    %789 = vmatpush1.msra.mxu0 0.0
    %790 = vmatprep.subr.mxu0 0.0
    %791 = vmatpush1.msra.mxu0 0.0
    %792 = vmatprep.subr.mxu0 0.0
    %793 = vmatpush1.msra.mxu0 0.0
    %794 = vmatprep.subr.mxu0 0.0
    %795 = vmatpush1.msra.mxu0 0.0
    %796 = vmatprep.subr.mxu0 0.0
    %797 = vmatpush1.msra.mxu0 0.0
    %798 = vmatprep.subr.mxu0 0.0
    %799 = vmatpush1.msra.mxu0 0.0
    %800 = vmatprep.subr.mxu0 0.0
    %801 = vmatpush1.msra.mxu0 0.0
    %802 = vmatprep.subr.mxu0 0.0
    %803 = vmatpush1.msra.mxu0 0.0
    %804 = vmatprep.subr.mxu0 0.0
    %805 = vmatpush1.msra.mxu0 0.0
    %806 = vmatprep.subr.mxu0 0.0
    %807 = vmatpush1.msra.mxu0 0.0
    %808 = vmatprep.subr.mxu0 0.0
    %809 = vmatpush1.msra.mxu0 0.0
    %810 = vmatprep.subr.mxu0 0.0
    %811 = vmatpush1.msra.mxu0 0.0
    %812 = vmatprep.mubr.f32.mxu0 0.0
    %813 = vmatmul.mubr.f32.gmra.mrb[0].mxu0 %v746
    %v814 = vpop.f32.mrb[0].mxu0
    %v815 = vadd.f32 0.0, %v814
    %v816 = vpop.f32.mrb[0].mxu0
    %817 = vdwg.mxu0
    %v818 = vadd.f32 %v745, %v815
    %v819 = vxor.u32 %v818, 2147483648
    %v820 = vmul.f32 %v819, 1.442695
    %v821 = vpow.pop %v820
    %v822 = vadd.f32 %v821, 1.0
    %v823 = vrcp.pop %v822
    %v824 = vmul.f32 1.0, %v823
    %v825 = vtanh.pop %v818
    %v826 = vmul.f32 %v824, %v731
    %828 = vrot.lane.b32.xlu0 %v825, 64
    %v829 = vpop.permute.xlu0 %828
    %v831 = vmul.f32 %v824, %v829
    %833 = vrot.lane.b32.xlu0 %v831, 32
    %v834 = vpop.permute.xlu0 %833
    %v836 = vadd.f32 %v826, %v834
    %v837 = vtanh.pop %v836
    %839 = vrot.lane.b32.xlu0 %v837, 64
    %v840 = vpop.permute.xlu0 %839
    %v842 = vmul.f32 %v824, %v840
    %844 = vrot.lane.b32.xlu0 %v842, 32
    %v845 = vpop.permute.xlu0 %844
    %s847 = scalar_lea.vmem [#allocation9], 40
    %848 = vst.msk [vmem:[%s847] sm:$0xff] %vm78, %v845
    %s849 = scalar_lea.vmem [#allocation2], 48
    %v850 = vld [vmem:[%s849] sm:$0xff]
    %v851 = vsel %vm78, %v845, 0
    %853 = vmatprep.subr.mxu0 0.0
    %854 = vmatpush1.msra.mxu0 %v216
    %855 = vmatprep.subr.mxu0 0.0
    %856 = vmatpush1.msra.mxu0 %v217
    %857 = vmatprep.subr.mxu0 0.0
    %858 = vmatpush1.msra.mxu0 %v218
    %859 = vmatprep.subr.mxu0 0.0
    %860 = vmatpush1.msra.mxu0 %v219
    %861 = vmatprep.subr.mxu0 0.0
    %862 = vmatpush1.msra.mxu0 0.0
    %863 = vmatprep.subr.mxu0 0.0
    %864 = vmatpush1.msra.mxu0 0.0
    %865 = vmatprep.subr.mxu0 0.0
    %866 = vmatpush1.msra.mxu0 0.0
    %867 = vmatprep.subr.mxu0 0.0
    %868 = vmatpush1.msra.mxu0 0.0
    %869 = vmatprep.subr.mxu0 0.0
    %870 = vmatpush1.msra.mxu0 0.0
    %871 = vmatprep.subr.mxu0 0.0
    %872 = vmatpush1.msra.mxu0 0.0
    %873 = vmatprep.subr.mxu0 0.0
    %874 = vmatpush1.msra.mxu0 0.0
    %875 = vmatprep.subr.mxu0 0.0
    %876 = vmatpush1.msra.mxu0 0.0
    %877 = vmatprep.subr.mxu0 0.0
    %878 = vmatpush1.msra.mxu0 0.0
    %879 = vmatprep.subr.mxu0 0.0
    %880 = vmatpush1.msra.mxu0 0.0
    %881 = vmatprep.subr.mxu0 0.0
    %882 = vmatpush1.msra.mxu0 0.0
    %883 = vmatprep.subr.mxu0 0.0
    %884 = vmatpush1.msra.mxu0 0.0
    %885 = vmatprep.subr.mxu0 0.0
    %886 = vmatpush1.msra.mxu0 0.0
    %887 = vmatprep.subr.mxu0 0.0
    %888 = vmatpush1.msra.mxu0 0.0
    %889 = vmatprep.subr.mxu0 0.0
    %890 = vmatpush1.msra.mxu0 0.0
    %891 = vmatprep.subr.mxu0 0.0
    %892 = vmatpush1.msra.mxu0 0.0
    %893 = vmatprep.subr.mxu0 0.0
    %894 = vmatpush1.msra.mxu0 0.0
    %895 = vmatprep.subr.mxu0 0.0
    %896 = vmatpush1.msra.mxu0 0.0
    %897 = vmatprep.subr.mxu0 0.0
    %898 = vmatpush1.msra.mxu0 0.0
    %899 = vmatprep.subr.mxu0 0.0
    %900 = vmatpush1.msra.mxu0 0.0
    %901 = vmatprep.subr.mxu0 0.0
    %902 = vmatpush1.msra.mxu0 0.0
    %903 = vmatprep.subr.mxu0 0.0
    %904 = vmatpush1.msra.mxu0 0.0
    %905 = vmatprep.subr.mxu0 0.0
    %906 = vmatpush1.msra.mxu0 0.0
    %907 = vmatprep.subr.mxu0 0.0
    %908 = vmatpush1.msra.mxu0 0.0
    %909 = vmatprep.subr.mxu0 0.0
    %910 = vmatpush1.msra.mxu0 0.0
    %911 = vmatprep.subr.mxu0 0.0
    %912 = vmatpush1.msra.mxu0 0.0
    %913 = vmatprep.subr.mxu0 0.0
    %914 = vmatpush1.msra.mxu0 0.0
    %915 = vmatprep.subr.mxu0 0.0
    %916 = vmatpush1.msra.mxu0 0.0
    %917 = vmatprep.mubr.f32.mxu0 0.0
    %918 = vmatmul.mubr.f32.gmra.mrb[0].mxu0 %v851
    %v919 = vpop.f32.mrb[0].mxu0
    %v920 = vadd.f32 0.0, %v919
    %v921 = vpop.f32.mrb[0].mxu0
    %922 = vdwg.mxu0
    %v923 = vadd.f32 %v850, %v920
    %v924 = vxor.u32 %v923, 2147483648
    %v925 = vmul.f32 %v924, 1.442695
    %v926 = vpow.pop %v925
    %v927 = vadd.f32 %v926, 1.0
    %v928 = vrcp.pop %v927
    %v929 = vmul.f32 1.0, %v928
    %v930 = vtanh.pop %v923
    %v931 = vmul.f32 %v929, %v836
    %933 = vrot.lane.b32.xlu0 %v930, 64
    %v934 = vpop.permute.xlu0 %933
    %v936 = vmul.f32 %v929, %v934
    %938 = vrot.lane.b32.xlu0 %v936, 32
    %v939 = vpop.permute.xlu0 %938
    %v941 = vadd.f32 %v931, %v939
    %v942 = vtanh.pop %v941
    %944 = vrot.lane.b32.xlu0 %v942, 64
    %v945 = vpop.permute.xlu0 %944
    %v947 = vmul.f32 %v929, %v945
    %949 = vrot.lane.b32.xlu0 %v947, 32
    %v950 = vpop.permute.xlu0 %949
    %s952 = scalar_lea.vmem [#allocation9], 48
    %953 = vst.msk [vmem:[%s952] sm:$0xff] %vm78, %v950
    %s954 = scalar_lea.vmem [#allocation2], 56
    %v955 = vld [vmem:[%s954] sm:$0xff]
    %v956 = vsel %vm78, %v950, 0
    %958 = vmatprep.subr.mxu0 0.0
    %959 = vmatpush1.msra.mxu0 %v216
    %960 = vmatprep.subr.mxu0 0.0
    %961 = vmatpush1.msra.mxu0 %v217
    %962 = vmatprep.subr.mxu0 0.0
    %963 = vmatpush1.msra.mxu0 %v218
    %964 = vmatprep.subr.mxu0 0.0
    %965 = vmatpush1.msra.mxu0 %v219
    %966 = vmatprep.subr.mxu0 0.0
    %967 = vmatpush1.msra.mxu0 0.0
    %968 = vmatprep.subr.mxu0 0.0
    %969 = vmatpush1.msra.mxu0 0.0
    %970 = vmatprep.subr.mxu0 0.0
    %971 = vmatpush1.msra.mxu0 0.0
    %972 = vmatprep.subr.mxu0 0.0
    %973 = vmatpush1.msra.mxu0 0.0
    %974 = vmatprep.subr.mxu0 0.0
    %975 = vmatpush1.msra.mxu0 0.0
    %976 = vmatprep.subr.mxu0 0.0
    %977 = vmatpush1.msra.mxu0 0.0
    %978 = vmatprep.subr.mxu0 0.0
    %979 = vmatpush1.msra.mxu0 0.0
    %980 = vmatprep.subr.mxu0 0.0
    %981 = vmatpush1.msra.mxu0 0.0
    %982 = vmatprep.subr.mxu0 0.0
    %983 = vmatpush1.msra.mxu0 0.0
    %984 = vmatprep.subr.mxu0 0.0
    %985 = vmatpush1.msra.mxu0 0.0
    %986 = vmatprep.subr.mxu0 0.0
    %987 = vmatpush1.msra.mxu0 0.0
    %988 = vmatprep.subr.mxu0 0.0
    %989 = vmatpush1.msra.mxu0 0.0
    %990 = vmatprep.subr.mxu0 0.0
    %991 = vmatpush1.msra.mxu0 0.0
    %992 = vmatprep.subr.mxu0 0.0
    %993 = vmatpush1.msra.mxu0 0.0
    %994 = vmatprep.subr.mxu0 0.0
    %995 = vmatpush1.msra.mxu0 0.0
    %996 = vmatprep.subr.mxu0 0.0
    %997 = vmatpush1.msra.mxu0 0.0
    %998 = vmatprep.subr.mxu0 0.0
    %999 = vmatpush1.msra.mxu0 0.0
    %1000 = vmatprep.subr.mxu0 0.0
    %1001 = vmatpush1.msra.mxu0 0.0
    %1002 = vmatprep.subr.mxu0 0.0
    %1003 = vmatpush1.msra.mxu0 0.0
    %1004 = vmatprep.subr.mxu0 0.0
    %1005 = vmatpush1.msra.mxu0 0.0
    %1006 = vmatprep.subr.mxu0 0.0
    %1007 = vmatpush1.msra.mxu0 0.0
    %1008 = vmatprep.subr.mxu0 0.0
    %1009 = vmatpush1.msra.mxu0 0.0
    %1010 = vmatprep.subr.mxu0 0.0
    %1011 = vmatpush1.msra.mxu0 0.0
    %1012 = vmatprep.subr.mxu0 0.0
    %1013 = vmatpush1.msra.mxu0 0.0
    %1014 = vmatprep.subr.mxu0 0.0
    %1015 = vmatpush1.msra.mxu0 0.0
    %1016 = vmatprep.subr.mxu0 0.0
    %1017 = vmatpush1.msra.mxu0 0.0
    %1018 = vmatprep.subr.mxu0 0.0
    %1019 = vmatpush1.msra.mxu0 0.0
    %1020 = vmatprep.subr.mxu0 0.0
    %1021 = vmatpush1.msra.mxu0 0.0
    %1022 = vmatprep.mubr.f32.mxu0 0.0
    %1023 = vmatmul.mubr.f32.gmra.mrb[0].mxu0 %v956
    %v1024 = vpop.f32.mrb[0].mxu0
    %v1025 = vadd.f32 0.0, %v1024
    %v1026 = vpop.f32.mrb[0].mxu0
    %1027 = vdwg.mxu0
    %v1028 = vadd.f32 %v955, %v1025
    %v1029 = vxor.u32 %v1028, 2147483648
    %v1030 = vmul.f32 %v1029, 1.442695
    %v1031 = vpow.pop %v1030
    %v1032 = vadd.f32 %v1031, 1.0
    %v1033 = vrcp.pop %v1032
    %v1034 = vmul.f32 1.0, %v1033
    %v1035 = vtanh.pop %v1028
    %v1036 = vmul.f32 %v1034, %v941
    %1038 = vrot.lane.b32.xlu0 %v1035, 64
    %v1039 = vpop.permute.xlu0 %1038
    %v1041 = vmul.f32 %v1034, %v1039
    %1043 = vrot.lane.b32.xlu0 %v1041, 32
    %v1044 = vpop.permute.xlu0 %1043
    %v1046 = vadd.f32 %v1036, %v1044
    %v1047 = vtanh.pop %v1046
    %1049 = vrot.lane.b32.xlu0 %v1047, 64
    %v1050 = vpop.permute.xlu0 %1049
    %v1052 = vmul.f32 %v1034, %v1050
    %1054 = vrot.lane.b32.xlu0 %v1052, 32
    %v1055 = vpop.permute.xlu0 %1054
    %s1057 = scalar_lea.vmem [#allocation9], 56
    %1058 = vst.msk [vmem:[%s1057] sm:$0xff] %vm78, %v1055
    // Predicated region
    $region30: #{tpu_custom_call.1} parent=1 // pred_check
      _
    $region31: #{tpu_custom_call.1} parent=1 // pred_check_branch
      %1060 = sbr.rel (0) target = $region33
    $region32: #{tpu_custom_call.1} parent=1 // pred_region
      %s1062 = ssub.s32 1024, 1024
      %1063 = vsyncadd [#allocation5], %s1062
      %s1064 = sshll.u32 [#allocation9], 4
      %s1065 = int_to_ptr.vmem [resolvable:$true] %s1064
      %1070 = dma.vmem_to_hbm [thread:$0]  %s1065, 1024, %s4, [#allocation5], 128, 128, 8
    $region33: #{tpu_custom_call.1} parent=1 // pred_fallthru
      _
    // Predicated region
    $region34: #{tpu_custom_call.1} parent=1 // pred_check
      _
    $region35: #{tpu_custom_call.1} parent=1 // pred_check_branch
      %1072 = sbr.rel (0) target = $region37
    $region36: #{tpu_custom_call.1} parent=1 // pred_region
      %1073 = dma.done [#allocation5], 1024
    $region37: #{tpu_custom_call.1} parent=1 // pred_fallthru
      _
    %1074 = vsyncpa [#allocation4], 1
    %1075 = vsyncpa [#allocation7], 1
    %1076 = vsyncpa [#allocation5], 1

</llo_original>
